<compile_context>
chip_gen: v7x
topology: tpu7x:2x2x1
jax: 0.10.0
libtpu: 0.0.40
codegen_flags: <defaults>
</compile_context>

<pallas_src>
import numpy as np
import jax
import jax.numpy as jnp
from jax import lax
from jax.experimental import pallas as pl
from jax.experimental.pallas import tpu as pltpu


# ----------------------------------------------------------------------------
# Host-side (numpy) construction of the banded, W-packed matmul weights
# ----------------------------------------------------------------------------
def _sel_direct(W, dx):
    """(W_in, W_out) selection for a same-resolution input column band."""
    A = np.zeros((W, W), np.float32)
    for wo in range(W):
        wi = wo + dx - 1
        if 0 <= wi < W:                       # conv padding=1 zero columns
            A[wi, wo] = 1.0
    return A


def _sel_upsampled(w_src, W_out, dx, pad_left):
    """(w_src, W_out) selection folding nearest x2 W-upsample + F.pad (diffX)."""
    B = np.zeros((w_src, W_out), np.float32)
    for wo in range(W_out):
        cin = wo + dx - 1                     # column of the pad=1 conv input
        if not (0 <= cin < W_out):
            continue                          # conv zero padding
        j = cin - pad_left                    # column of the x2-upsampled x
        if not (0 <= j < 2 * w_src):
            continue                          # F.pad zero padding (diffX)
        B[j // 2, wo] = 1.0                   # nearest: upsampled col j <- src col j//2
    return B


def _band_matrix(w_hwio, scale, sel_per_dx):
    """w_hwio: (3,3,Ci,Co) -> (3, Wi*Ci, Wo*Co) banded matrix, BN scale folded.

    Row packing  = (w_in  major, ci minor)  == the (w, c) lane packing of the inputs.
    Col packing  = (w_out major, co minor)  == the (w, c) lane packing of the output.
    """
    _, _, Ci, Co = w_hwio.shape
    Wi, Wo = sel_per_dx[0].shape
    col_scale = np.tile(np.asarray(scale, np.float32), Wo)      # lane (wo,co) -> scale[co]
    mats = []
    for dy in range(3):
        m = np.zeros((Wi * Ci, Wo * Co), np.float32)
        for dx in range(3):
            m += np.kron(sel_per_dx[dx], np.asarray(w_hwio[dy, dx], np.float32))
        mats.append(m * col_scale[None, :])
    return np.stack(mats, 0)


def fold_decoder_block_params(params, x_hw, skip_hw=None):
    """One-time host-side weight prep: fold eval-mode BN scale into the weights,
    split conv1 into x-path / skip-path partial matmuls (fusing the channel
    concat), and fold the nearest x2 W-upsample + F.pad columns into the x-path
    banded matrix.  Returns bf16 matmul weights + f32 per-lane biases."""
    h, w = x_hw
    if skip_hw is None:
        H, W = 2 * h, 2 * w
        pad_left = 0
    else:
        H, W = skip_hw
        diffY, diffX = H - 2 * h, W - 2 * w
        assert diffY >= 0 and diffX >= 0, "skip must be spatially >= upsampled x"
        pad_left = diffX // 2

    w1 = np.asarray(params["w1"], np.float32)        # (3,3,Cx+Cs,Cout), HWIO
    w2 = np.asarray(params["w2"], np.float32)        # (3,3,Cout,Cout)
    s1 = np.asarray(params["scale1"], np.float32)
    b1 = np.asarray(params["bias1"], np.float32)
    s2 = np.asarray(params["scale2"], np.float32)
    b2 = np.asarray(params["bias2"], np.float32)
    Cx = int(params["in_channels"])
    Cs = w1.shape[2] - Cx
    Cout = w1.shape[3]

    sel_up = [_sel_upsampled(w, W, dx, pad_left) for dx in range(3)]
    sel_dir = [_sel_direct(W, dx) for dx in range(3)]

    folded = {
        "m1x": jnp.asarray(_band_matrix(w1[:, :, :Cx, :], s1, sel_up), jnp.bfloat16),
        "b1": jnp.asarray(np.tile(b1, W)[None, :], jnp.float32),       # (1, W*Cout)
        "m2": jnp.asarray(_band_matrix(w2, s2, sel_dir), jnp.bfloat16),
        "b2": jnp.asarray(np.tile(b2, W)[None, :], jnp.float32),
        "m1s": (jnp.asarray(_band_matrix(w1[:, :, Cx:, :], s1, sel_dir), jnp.bfloat16)
                if (skip_hw is not None and Cs > 0) else None),
    }
    assert folded["m1x"].shape == (3, w * Cx, W * Cout)
    return folded


# ----------------------------------------------------------------------------
# Fused kernel: conv1(3x3,BN,ReLU) -> conv2(3x3,BN,ReLU) for one batch element
# ----------------------------------------------------------------------------
def _make_kernel(H, has_skip):
    def kernel(*refs):
        if has_skip:
            xh_ref, sk_ref, m1x_ref, m1s_ref, b1_ref, m2_ref, b2_ref, o_ref = refs
        else:
            xh_ref, m1x_ref, b1_ref, m2_ref, b2_ref, o_ref = refs
            sk_ref = m1s_ref = None

        # ---- conv1 : dy row-shifts are leading-axis ref slices; dx taps,
        #              W-upsample, F.pad, channel concat & BN scale live in the
        #              banded weights.  f32 MXU accumulation. ----
        acc1 = None
        for dy in range(3):                                   # static unroll
            t = jnp.dot(xh_ref[0, dy:dy + H, :], m1x_ref[dy],
                        preferred_element_type=jnp.float32)
            if has_skip:
                t = t + jnp.dot(sk_ref[0, dy:dy + H, :], m1s_ref[dy],
                                preferred_element_type=jnp.float32)
            acc1 = t if acc1 is None else acc1 + t
        y1 = jnp.maximum(acc1 + b1_ref[...], 0.0).astype(jnp.bfloat16)   # (H, P)

        # ---- conv2 : +/-1 row halo realized with tiny shift matmuls (zero
        #              first/last row), so no padded scratch, no zero-fill,
        #              no sublane-offset stores. ----
        r = lax.broadcasted_iota(jnp.int32, (H, H), 0)
        c = lax.broadcasted_iota(jnp.int32, (H, H), 1)
        shift_dn = (r == c + 1).astype(jnp.bfloat16)          # row h <- y1[h-1]
        shift_up = (c == r + 1).astype(jnp.bfloat16)          # row h <- y1[h+1]
        y1_dn = jnp.dot(shift_dn, y1,
                        preferred_element_type=jnp.float32).astype(jnp.bfloat16)
        y1_up = jnp.dot(shift_up, y1,
                        preferred_element_type=jnp.float32).astype(jnp.bfloat16)

        acc2 = jnp.dot(y1_dn, m2_ref[0], preferred_element_type=jnp.float32)
        acc2 = acc2 + jnp.dot(y1, m2_ref[1], preferred_element_type=jnp.float32)
        acc2 = acc2 + jnp.dot(y1_up, m2_ref[2], preferred_element_type=jnp.float32)
        y2 = jnp.maximum(acc2 + b2_ref[...], 0.0)

        # Lane-dense flat NHWC output (H, W*Cout) -- exactly the real data.
        o_ref[0] = y2.astype(o_ref.dtype)
    return kernel


# ----------------------------------------------------------------------------
# DecoderBlock.forward
# ----------------------------------------------------------------------------
def decoder_block_forward(folded, x_nchw, skip_nchw=None):
    n, cx, h, w = x_nchw.shape
    has_skip = skip_nchw is not None
    if has_skip:
        H, W = skip_nchw.shape[2], skip_nchw.shape[3]
        diffY = H - 2 * h
        pad_top, pad_bot = diffY // 2, diffY - diffY // 2
    else:
        H, W = 2 * h, 2 * w
        pad_top = pad_bot = 0
    P = folded["m2"].shape[-1]
    Cout = P // W

    # x path: bf16, (w, c) packed into lanes, nearest x2 upsample along H only
    # (W-upsample + diffX pad are folded into m1x), +1 zero halo row each side
    # (diffY pad merged into the same halo rows).
    xq = jnp.transpose(x_nchw, (0, 2, 3, 1)).astype(jnp.bfloat16)      # (N, h, w, Cx)
    xq = xq.reshape(n, h, w * cx)
    xq = jnp.repeat(xq, 2, axis=1)                                     # (N, 2h, w*Cx)
    xh = jnp.pad(xq, ((0, 0), (pad_top + 1, pad_bot + 1), (0, 0)))     # (N, H+2, Lx)

    args = [xh]
    in_specs = [pl.BlockSpec((1, H + 2, xh.shape[-1]), lambda i: (i, 0, 0))]

    if has_skip:
        cs = skip_nchw.shape[1]
        sk = jnp.transpose(skip_nchw, (0, 2, 3, 1)).astype(jnp.bfloat16)
        sk = sk.reshape(n, H, W * cs)
        sk = jnp.pad(sk, ((0, 0), (1, 1), (0, 0)))                     # (N, H+2, Ls)
        args.append(sk)
        in_specs.append(pl.BlockSpec((1, H + 2, W * cs), lambda i: (i, 0, 0)))

    args.append(folded["m1x"])
    in_specs.append(pl.BlockSpec(folded["m1x"].shape, lambda i: (0, 0, 0)))
    if has_skip:
        args.append(folded["m1s"])
        in_specs.append(pl.BlockSpec(folded["m1s"].shape, lambda i: (0, 0, 0)))
    args += [folded["b1"], folded["m2"], folded["b2"]]
    in_specs += [pl.BlockSpec((1, P), lambda i: (0, 0)),
                 pl.BlockSpec(folded["m2"].shape, lambda i: (0, 0, 0)),
                 pl.BlockSpec((1, P), lambda i: (0, 0))]

    out = pl.pallas_call(
        _make_kernel(H, has_skip),
        out_shape=jax.ShapeDtypeStruct((n, H, P), jnp.bfloat16),
        grid=(n,),
        in_specs=in_specs,
        out_specs=pl.BlockSpec((1, H, P), lambda i: (i, 0, 0)),
        compiler_params=pltpu.CompilerParams(
            dimension_semantics=("parallel",),   # megacore / v7x 2-TC over batch
            # per-step VMEM footprint ~0.2 MiB -> defaults are ample on all
            # generations; no vmem_limit_bytes override (see review).
        ),
    )(*args)

    # (N, H, W*Cout) is already flat NHWC: unpack + cast + NCHW in one XLA pass.
    out = out.reshape(n, H, W, Cout).astype(jnp.float32)
    # attention2 with attention_type=None is nn.Identity -> no-op.
    return jnp.transpose(out, (0, 3, 1, 2))


# ----------------------------------------------------------------------------
# Parameter init (Conv2dReLU: conv no-bias + eval-mode BatchNorm folded)
# ----------------------------------------------------------------------------
def init_decoder_block_params(key, in_channels, skip_channels, out_channels, eps=1e-5):
    k1, k2 = jax.random.split(key)

    def conv_bn(k, cin, cout):
        wgt = jax.random.normal(k, (3, 3, cin, cout), jnp.float32) * 0.1  # HWIO
        gamma = 1.0 + 0.01 * jnp.arange(cout, dtype=jnp.float32)
        beta = 0.01 * jnp.arange(cout, dtype=jnp.float32)
        running_mean = 0.05 * jnp.arange(cout, dtype=jnp.float32)
        running_var = 1.0 + 0.1 * jnp.ones((cout,), jnp.float32)
        scale = gamma / jnp.sqrt(running_var + eps)
        bias = beta - running_mean * scale
        return wgt, scale, bias

    w1, s1, b1 = conv_bn(k1, in_channels + skip_channels, out_channels)
    w2, s2, b2 = conv_bn(k2, out_channels, out_channels)
    return dict(w1=w1, scale1=s1, bias1=b1, w2=w2, scale2=s2, bias2=b2,
                in_channels=in_channels, skip_channels=skip_channels,
                out_channels=out_channels)


# ----------------------------------------------------------------------------
# Pure-XLA reference (same bf16 operand rounding as the kernel)
# ----------------------------------------------------------------------------
def decoder_block_reference(params, x_nchw, skip_nchw=None):
    def q(a):
        return a.astype(jnp.bfloat16).astype(jnp.float32)

    x = q(jnp.transpose(x_nchw, (0, 2, 3, 1)).astype(jnp.float32))
    x = jnp.repeat(jnp.repeat(x, 2, axis=1), 2, axis=2)            # nearest x2
    if skip_nchw is not None:
        skip = q(jnp.transpose(skip_nchw, (0, 2, 3, 1)).astype(jnp.float32))
        diffY = skip.shape[1] - x.shape[1]
        diffX = skip.shape[2] - x.shape[2]
        x = jnp.pad(x, ((0, 0), (diffY // 2, diffY - diffY // 2),
                        (diffX // 2, diffX - diffX // 2), (0, 0)))
        x = jnp.concatenate([x, skip], axis=-1)

    def conv_bn_relu(t, wgt, scale, bias):
        wf = q(wgt * scale[None, None, None, :])
        y = lax.conv_general_dilated(t, wf, (1, 1), ((1, 1), (1, 1)),
                                     dimension_numbers=("NHWC", "HWIO", "NHWC"))
        return jnp.maximum(y + bias[None, None, None, :], 0.0)

    y = conv_bn_relu(x, params["w1"], params["scale1"], params["bias1"])
    y = q(y)   # kernel keeps the conv1 activation in bf16
    y = conv_bn_relu(y, params["w2"], params["scale2"], params["bias2"])
    return jnp.transpose(y, (0, 3, 1, 2))


if __name__ == "__main__":
    key = jax.random.PRNGKey(0)
    kx, ks, kp, kp0, kx0 = jax.random.split(key, 5)
    fwd = jax.jit(decoder_block_forward)

    # ---- with skip: x (2,4,8,8) -> upsampled 16x16, skip (2,4,16,16), out 8 ch
    in_ch, skip_ch, out_ch = 4, 4, 8
    x = jax.random.normal(kx, (2, in_ch, 8, 8), jnp.float32)
    skip = jax.random.normal(ks, (2, skip_ch, 16, 16), jnp.float32)
    params = init_decoder_block_params(kp, in_ch, skip_ch, out_ch)
    folded = fold_decoder_block_params(params, x_hw=(8, 8), skip_hw=(16, 16))

    out = jax.block_until_ready(fwd(folded, x, skip))
    assert out.shape == (2, out_ch, 16, 16), out.shape
    ref = jax.block_until_ready(decoder_block_reference(params, x, skip))
    np.testing.assert_allclose(np.asarray(out), np.asarray(ref), rtol=5e-2, atol=5e-2)

    # ---- skip=None path (skip_channels=0 block)
    params0 = init_decoder_block_params(kp0, in_ch, 0, out_ch)
    folded0 = fold_decoder_block_params(params0, x_hw=(8, 8), skip_hw=None)
    x0 = jax.random.normal(kx0, (2, in_ch, 8, 8), jnp.float32)
    out0 = jax.block_until_ready(fwd(folded0, x0))
    assert out0.shape == (2, out_ch, 16, 16), out0.shape
    ref0 = jax.block_until_ready(decoder_block_reference(params0, x0))
    np.testing.assert_allclose(np.asarray(out0), np.asarray(ref0), rtol=5e-2, atol=5e-2)

    print("KERNEL_OK")
</pallas_src>

<mosaic_0001>
module attributes {stable_mosaic.version = 11 : i64} {
  func.func @kernel(%arg0: i32, %arg1: memref<1x18x32xbf16, #tpu.memory_space<vmem>>, %arg2: memref<1x18x64xbf16, #tpu.memory_space<vmem>>, %arg3: memref<3x32x128xbf16, #tpu.memory_space<vmem>>, %arg4: memref<3x64x128xbf16, #tpu.memory_space<vmem>>, %arg5: memref<1x128xf32, #tpu.memory_space<vmem>>, %arg6: memref<3x128x128xbf16, #tpu.memory_space<vmem>>, %arg7: memref<1x128xf32, #tpu.memory_space<vmem>>, %arg8: memref<1x16x128xbf16, #tpu.memory_space<vmem>>) attributes {dimension_semantics = [#tpu.dimension_semantics<parallel>], iteration_bounds = array<i64: 2>, scalar_prefetch = 0 : i64, scratch_operands = 0 : i64, tpu.core_type = #tpu.core_type<tc>, window_params = [{transform_indices = @transform_0, window_bounds = array<i64: 1, 18, 32>}, {transform_indices = @transform_1, window_bounds = array<i64: 1, 18, 64>}, {pipeline_mode = #tpu.pipeline_mode<synchronous>, transform_indices = @transform_2, window_bounds = array<i64: 3, 32, 128>}, {pipeline_mode = #tpu.pipeline_mode<synchronous>, transform_indices = @transform_3, window_bounds = array<i64: 3, 64, 128>}, {pipeline_mode = #tpu.pipeline_mode<synchronous>, transform_indices = @transform_4, window_bounds = array<i64: 1, 128>}, {pipeline_mode = #tpu.pipeline_mode<synchronous>, transform_indices = @transform_5, window_bounds = array<i64: 3, 128, 128>}, {pipeline_mode = #tpu.pipeline_mode<synchronous>, transform_indices = @transform_6, window_bounds = array<i64: 1, 128>}, {transform_indices = @transform_7, window_bounds = array<i64: 1, 16, 128>}]} {
    %c0 = arith.constant 0 : index
    %c0_0 = arith.constant 0 : index
    %c0_1 = arith.constant 0 : index
    %0 = vector.load %arg1[%c0, %c0_0, %c0_1] : memref<1x18x32xbf16, #tpu.memory_space<vmem>>, vector<1x16x32xbf16>
    %1 = vector.shape_cast %0 : vector<1x16x32xbf16> to vector<16x32xbf16>
    %c0_2 = arith.constant 0 : index
    %c0_3 = arith.constant 0 : index
    %c0_4 = arith.constant 0 : index
    %2 = vector.load %arg3[%c0_2, %c0_3, %c0_4] : memref<3x32x128xbf16, #tpu.memory_space<vmem>>, vector<1x32x128xbf16>
    %3 = vector.shape_cast %2 : vector<1x32x128xbf16> to vector<32x128xbf16>
    %cst = arith.constant dense<0.000000e+00> : vector<16x128xf32>
    %4 = tpu.matmul %1, %3, %cst {dimension_numbers = #tpu.dot_dimension_numbers<[1], [0], [0], [1], [0, 0, 1, 1], [], []>} : vector<16x32xbf16>, vector<32x128xbf16>, vector<16x128xf32> -> vector<16x128xf32>
    %c0_5 = arith.constant 0 : index
    %c0_6 = arith.constant 0 : index
    %c0_7 = arith.constant 0 : index
    %5 = vector.load %arg2[%c0_5, %c0_6, %c0_7] : memref<1x18x64xbf16, #tpu.memory_space<vmem>>, vector<1x16x64xbf16>
    %6 = vector.shape_cast %5 : vector<1x16x64xbf16> to vector<16x64xbf16>
    %c0_8 = arith.constant 0 : index
    %c0_9 = arith.constant 0 : index
    %c0_10 = arith.constant 0 : index
    %7 = vector.load %arg4[%c0_8, %c0_9, %c0_10] : memref<3x64x128xbf16, #tpu.memory_space<vmem>>, vector<1x64x128xbf16>
    %8 = vector.shape_cast %7 : vector<1x64x128xbf16> to vector<64x128xbf16>
    %cst_11 = arith.constant dense<0.000000e+00> : vector<16x128xf32>
    %9 = tpu.matmul %6, %8, %cst_11 {dimension_numbers = #tpu.dot_dimension_numbers<[1], [0], [0], [1], [0, 0, 1, 1], [], []>} : vector<16x64xbf16>, vector<64x128xbf16>, vector<16x128xf32> -> vector<16x128xf32>
    %10 = arith.addf %4, %9 : vector<16x128xf32>
    %c0_12 = arith.constant 0 : index
    %c1 = arith.constant 1 : index
    %c0_13 = arith.constant 0 : index
    %11 = vector.load %arg1[%c0_12, %c1, %c0_13] : memref<1x18x32xbf16, #tpu.memory_space<vmem>>, vector<1x16x32xbf16>
    %12 = vector.shape_cast %11 : vector<1x16x32xbf16> to vector<16x32xbf16>
    %c1_14 = arith.constant 1 : index
    %c0_15 = arith.constant 0 : index
    %c0_16 = arith.constant 0 : index
    %13 = vector.load %arg3[%c1_14, %c0_15, %c0_16] : memref<3x32x128xbf16, #tpu.memory_space<vmem>>, vector<1x32x128xbf16>
    %14 = vector.shape_cast %13 : vector<1x32x128xbf16> to vector<32x128xbf16>
    %cst_17 = arith.constant dense<0.000000e+00> : vector<16x128xf32>
    %15 = tpu.matmul %12, %14, %cst_17 {dimension_numbers = #tpu.dot_dimension_numbers<[1], [0], [0], [1], [0, 0, 1, 1], [], []>} : vector<16x32xbf16>, vector<32x128xbf16>, vector<16x128xf32> -> vector<16x128xf32>
    %c0_18 = arith.constant 0 : index
    %c1_19 = arith.constant 1 : index
    %c0_20 = arith.constant 0 : index
    %16 = vector.load %arg2[%c0_18, %c1_19, %c0_20] : memref<1x18x64xbf16, #tpu.memory_space<vmem>>, vector<1x16x64xbf16>
    %17 = vector.shape_cast %16 : vector<1x16x64xbf16> to vector<16x64xbf16>
    %c1_21 = arith.constant 1 : index
    %c0_22 = arith.constant 0 : index
    %c0_23 = arith.constant 0 : index
    %18 = vector.load %arg4[%c1_21, %c0_22, %c0_23] : memref<3x64x128xbf16, #tpu.memory_space<vmem>>, vector<1x64x128xbf16>
    %19 = vector.shape_cast %18 : vector<1x64x128xbf16> to vector<64x128xbf16>
    %cst_24 = arith.constant dense<0.000000e+00> : vector<16x128xf32>
    %20 = tpu.matmul %17, %19, %cst_24 {dimension_numbers = #tpu.dot_dimension_numbers<[1], [0], [0], [1], [0, 0, 1, 1], [], []>} : vector<16x64xbf16>, vector<64x128xbf16>, vector<16x128xf32> -> vector<16x128xf32>
    %21 = arith.addf %15, %20 : vector<16x128xf32>
    %22 = arith.addf %10, %21 : vector<16x128xf32>
    %c0_25 = arith.constant 0 : index
    %c2 = arith.constant 2 : index
    %c0_26 = arith.constant 0 : index
    %23 = vector.load %arg1[%c0_25, %c2, %c0_26] : memref<1x18x32xbf16, #tpu.memory_space<vmem>>, vector<1x16x32xbf16>
    %24 = vector.shape_cast %23 : vector<1x16x32xbf16> to vector<16x32xbf16>
    %c2_27 = arith.constant 2 : index
    %c0_28 = arith.constant 0 : index
    %c0_29 = arith.constant 0 : index
    %25 = vector.load %arg3[%c2_27, %c0_28, %c0_29] : memref<3x32x128xbf16, #tpu.memory_space<vmem>>, vector<1x32x128xbf16>
    %26 = vector.shape_cast %25 : vector<1x32x128xbf16> to vector<32x128xbf16>
    %cst_30 = arith.constant dense<0.000000e+00> : vector<16x128xf32>
    %27 = tpu.matmul %24, %26, %cst_30 {dimension_numbers = #tpu.dot_dimension_numbers<[1], [0], [0], [1], [0, 0, 1, 1], [], []>} : vector<16x32xbf16>, vector<32x128xbf16>, vector<16x128xf32> -> vector<16x128xf32>
    %c0_31 = arith.constant 0 : index
    %c2_32 = arith.constant 2 : index
    %c0_33 = arith.constant 0 : index
    %28 = vector.load %arg2[%c0_31, %c2_32, %c0_33] : memref<1x18x64xbf16, #tpu.memory_space<vmem>>, vector<1x16x64xbf16>
    %29 = vector.shape_cast %28 : vector<1x16x64xbf16> to vector<16x64xbf16>
    %c2_34 = arith.constant 2 : index
    %c0_35 = arith.constant 0 : index
    %c0_36 = arith.constant 0 : index
    %30 = vector.load %arg4[%c2_34, %c0_35, %c0_36] : memref<3x64x128xbf16, #tpu.memory_space<vmem>>, vector<1x64x128xbf16>
    %31 = vector.shape_cast %30 : vector<1x64x128xbf16> to vector<64x128xbf16>
    %cst_37 = arith.constant dense<0.000000e+00> : vector<16x128xf32>
    %32 = tpu.matmul %29, %31, %cst_37 {dimension_numbers = #tpu.dot_dimension_numbers<[1], [0], [0], [1], [0, 0, 1, 1], [], []>} : vector<16x64xbf16>, vector<64x128xbf16>, vector<16x128xf32> -> vector<16x128xf32>
    %33 = arith.addf %27, %32 : vector<16x128xf32>
    %34 = arith.addf %22, %33 : vector<16x128xf32>
    %c0_38 = arith.constant 0 : index
    %c0_39 = arith.constant 0 : index
    %35 = vector.load %arg5[%c0_38, %c0_39] : memref<1x128xf32, #tpu.memory_space<vmem>>, vector<1x128xf32>
    %36 = vector.broadcast %35 : vector<1x128xf32> to vector<16x128xf32>
    %37 = arith.addf %34, %36 : vector<16x128xf32>
    %cst_40 = arith.constant 0.000000e+00 : f32
    %38 = vector.broadcast %cst_40 : f32 to vector<16x128xf32>
    %39 = arith.maximumf %37, %38 : vector<16x128xf32>
    %40 = arith.truncf %39 : vector<16x128xf32> to vector<16x128xbf16>
    %41 = tpu.iota {dimensions = array<i32: 0>} : vector<16x16xi32>
    %42 = tpu.iota {dimensions = array<i32: 1>} : vector<16x16xi32>
    %c1_i32 = arith.constant 1 : i32
    %43 = vector.broadcast %c1_i32 : i32 to vector<16x16xi32>
    %44 = arith.addi %42, %43 : vector<16x16xi32>
    %45 = arith.cmpi eq, %41, %44 : vector<16x16xi32>
    %46 = arith.extui %45 : vector<16x16xi1> to vector<16x16xi32>
    %47 = arith.sitofp %46 : vector<16x16xi32> to vector<16x16xf32>
    %48 = arith.truncf %47 : vector<16x16xf32> to vector<16x16xbf16>
    %c1_i32_41 = arith.constant 1 : i32
    %49 = vector.broadcast %c1_i32_41 : i32 to vector<16x16xi32>
    %50 = arith.addi %41, %49 : vector<16x16xi32>
    %51 = arith.cmpi eq, %42, %50 : vector<16x16xi32>
    %52 = arith.extui %51 : vector<16x16xi1> to vector<16x16xi32>
    %53 = arith.sitofp %52 : vector<16x16xi32> to vector<16x16xf32>
    %54 = arith.truncf %53 : vector<16x16xf32> to vector<16x16xbf16>
    %cst_42 = arith.constant dense<0.000000e+00> : vector<16x128xf32>
    %55 = tpu.matmul %48, %40, %cst_42 {dimension_numbers = #tpu.dot_dimension_numbers<[1], [0], [0], [1], [0, 0, 1, 1], [], []>} : vector<16x16xbf16>, vector<16x128xbf16>, vector<16x128xf32> -> vector<16x128xf32>
    %56 = arith.truncf %55 : vector<16x128xf32> to vector<16x128xbf16>
    %cst_43 = arith.constant dense<0.000000e+00> : vector<16x128xf32>
    %57 = tpu.matmul %54, %40, %cst_43 {dimension_numbers = #tpu.dot_dimension_numbers<[1], [0], [0], [1], [0, 0, 1, 1], [], []>} : vector<16x16xbf16>, vector<16x128xbf16>, vector<16x128xf32> -> vector<16x128xf32>
    %58 = arith.truncf %57 : vector<16x128xf32> to vector<16x128xbf16>
    %c0_44 = arith.constant 0 : index
    %c0_45 = arith.constant 0 : index
    %c0_46 = arith.constant 0 : index
    %59 = vector.load %arg6[%c0_44, %c0_45, %c0_46] : memref<3x128x128xbf16, #tpu.memory_space<vmem>>, vector<1x128x128xbf16>
    %60 = vector.shape_cast %59 : vector<1x128x128xbf16> to vector<128x128xbf16>
    %cst_47 = arith.constant dense<0.000000e+00> : vector<16x128xf32>
    %61 = tpu.matmul %56, %60, %cst_47 {dimension_numbers = #tpu.dot_dimension_numbers<[1], [0], [0], [1], [0, 0, 1, 1], [], []>} : vector<16x128xbf16>, vector<128x128xbf16>, vector<16x128xf32> -> vector<16x128xf32>
    %c1_48 = arith.constant 1 : index
    %c0_49 = arith.constant 0 : index
    %c0_50 = arith.constant 0 : index
    %62 = vector.load %arg6[%c1_48, %c0_49, %c0_50] : memref<3x128x128xbf16, #tpu.memory_space<vmem>>, vector<1x128x128xbf16>
    %63 = vector.shape_cast %62 : vector<1x128x128xbf16> to vector<128x128xbf16>
    %cst_51 = arith.constant dense<0.000000e+00> : vector<16x128xf32>
    %64 = tpu.matmul %40, %63, %cst_51 {dimension_numbers = #tpu.dot_dimension_numbers<[1], [0], [0], [1], [0, 0, 1, 1], [], []>} : vector<16x128xbf16>, vector<128x128xbf16>, vector<16x128xf32> -> vector<16x128xf32>
    %65 = arith.addf %61, %64 : vector<16x128xf32>
    %c2_52 = arith.constant 2 : index
    %c0_53 = arith.constant 0 : index
    %c0_54 = arith.constant 0 : index
    %66 = vector.load %arg6[%c2_52, %c0_53, %c0_54] : memref<3x128x128xbf16, #tpu.memory_space<vmem>>, vector<1x128x128xbf16>
    %67 = vector.shape_cast %66 : vector<1x128x128xbf16> to vector<128x128xbf16>
    %cst_55 = arith.constant dense<0.000000e+00> : vector<16x128xf32>
    %68 = tpu.matmul %58, %67, %cst_55 {dimension_numbers = #tpu.dot_dimension_numbers<[1], [0], [0], [1], [0, 0, 1, 1], [], []>} : vector<16x128xbf16>, vector<128x128xbf16>, vector<16x128xf32> -> vector<16x128xf32>
    %69 = arith.addf %65, %68 : vector<16x128xf32>
    %c0_56 = arith.constant 0 : index
    %c0_57 = arith.constant 0 : index
    %70 = vector.load %arg7[%c0_56, %c0_57] : memref<1x128xf32, #tpu.memory_space<vmem>>, vector<1x128xf32>
    %71 = vector.broadcast %70 : vector<1x128xf32> to vector<16x128xf32>
    %72 = arith.addf %69, %71 : vector<16x128xf32>
    %cst_58 = arith.constant 0.000000e+00 : f32
    %73 = vector.broadcast %cst_58 : f32 to vector<16x128xf32>
    %74 = arith.maximumf %72, %73 : vector<16x128xf32>
    %75 = arith.truncf %74 : vector<16x128xf32> to vector<16x128xbf16>
    %c0_59 = arith.constant 0 : index
    %c0_60 = arith.constant 0 : index
    %c0_61 = arith.constant 0 : index
    %76 = vector.load %arg8[%c0_59, %c0_60, %c0_61] : memref<1x16x128xbf16, #tpu.memory_space<vmem>>, vector<1x16x128xbf16>
    %77 = vector.shape_cast %76 : vector<1x16x128xbf16> to vector<16x128xbf16>
    %78 = vector.shape_cast %75 : vector<16x128xbf16> to vector<1x16x128xbf16>
    tpu.vector_store %arg8[%c0_59, %c0_60, %c0_61], %78 {strides = array<i32>} : memref<1x16x128xbf16, #tpu.memory_space<vmem>>, vector<1x16x128xbf16>,
    return
  }
  func.func @transform_0(%arg0: i32) -> (i32, i32, i32) {
    %c0_i32 = arith.constant 0 : i32
    %c0_i32_0 = arith.constant 0 : i32
    %c0_i32_1 = arith.constant 0 : i32
    return %arg0, %c0_i32, %c0_i32_0 : i32, i32, i32
  }
  func.func @transform_1(%arg0: i32) -> (i32, i32, i32) {
    %c0_i32 = arith.constant 0 : i32
    %c0_i32_0 = arith.constant 0 : i32
    %c0_i32_1 = arith.constant 0 : i32
    return %arg0, %c0_i32, %c0_i32_0 : i32, i32, i32
  }
  func.func @transform_2(%arg0: i32) -> (i32, i32, i32) {
    %c0_i32 = arith.constant 0 : i32
    %c0_i32_0 = arith.constant 0 : i32
    %c0_i32_1 = arith.constant 0 : i32
    %c0_i32_2 = arith.constant 0 : i32
    return %c0_i32, %c0_i32_0, %c0_i32_1 : i32, i32, i32
  }
  func.func @transform_3(%arg0: i32) -> (i32, i32, i32) {
    %c0_i32 = arith.constant 0 : i32
    %c0_i32_0 = arith.constant 0 : i32
    %c0_i32_1 = arith.constant 0 : i32
    %c0_i32_2 = arith.constant 0 : i32
    return %c0_i32, %c0_i32_0, %c0_i32_1 : i32, i32, i32
  }
  func.func @transform_4(%arg0: i32) -> (i32, i32) {
    %c0_i32 = arith.constant 0 : i32
    %c0_i32_0 = arith.constant 0 : i32
    %c0_i32_1 = arith.constant 0 : i32
    return %c0_i32, %c0_i32_0 : i32, i32
  }
  func.func @transform_5(%arg0: i32) -> (i32, i32, i32) {
    %c0_i32 = arith.constant 0 : i32
    %c0_i32_0 = arith.constant 0 : i32
    %c0_i32_1 = arith.constant 0 : i32
    %c0_i32_2 = arith.constant 0 : i32
    return %c0_i32, %c0_i32_0, %c0_i32_1 : i32, i32, i32
  }
  func.func @transform_6(%arg0: i32) -> (i32, i32) {
    %c0_i32 = arith.constant 0 : i32
    %c0_i32_0 = arith.constant 0 : i32
    %c0_i32_1 = arith.constant 0 : i32
    return %c0_i32, %c0_i32_0 : i32, i32
  }
  func.func @transform_7(%arg0: i32) -> (i32, i32, i32) {
    %c0_i32 = arith.constant 0 : i32
    %c0_i32_0 = arith.constant 0 : i32
    %c0_i32_1 = arith.constant 0 : i32
    return %arg0, %c0_i32, %c0_i32_0 : i32, i32, i32
  }
}

</mosaic_0001>

<llo_original>
// kernel: decoder_block_forward.1
$region0: #{decoder_block_forward.1}
  #allocation0 [shape = 'u32[]', space=smem, size = 0x4, offset = 0x4, fixed_abs, tag = 'smem constant byte address 0x4 - core index']
  #allocation1 [shape = 'u32[144,128]{1,0:T(1,128)}', space=vmem, size = 0x12000, scoped, tag = 'internal scratch']
  %s0 = inlined_call_operand.vmem [shape: bf16[2,18,32], index: 0, kind: input, shape index: {}]
  %s1 = inlined_call_operand.vmem [shape: bf16[2,18,64], index: 1, kind: input, shape index: {}]
  %s2 = inlined_call_operand.vmem [shape: bf16[3,32,128], index: 2, kind: input, shape index: {}]
  %s3 = inlined_call_operand.vmem [shape: bf16[3,64,128], index: 3, kind: input, shape index: {}]
  %s4 = inlined_call_operand.vmem [shape: f32[1,128], index: 4, kind: input, shape index: {}]
  %s5 = inlined_call_operand.vmem [shape: bf16[3,128,128], index: 5, kind: input, shape index: {}]
  %s6 = inlined_call_operand.vmem [shape: f32[1,128], index: 6, kind: input, shape index: {}]
  %s7 = inlined_call_operand.vmem [shape: bf16[2,16,128], index: 7, kind: output, shape index: {}]
  %s8 = sld [smem:[#allocation0]]
  $region61: #{decoder_block_forward.1} parent=0
    _
  %s10 = ssub.s32 1, %s8
  %s11 = scalar_select 0, %s10, %s8
  loop: start=0, step=1, limit=4
  $region2: #{decoder_block_forward.1} parent=0 // loop_pre_header
    _
  $region3: #{decoder_block_forward.1} parent=0 // loop_header
    %s13 = sphi 0, %s17
    %p14 = scmp.ge.s32.totalorder %s13, 4
    %s23 = sphi 0, %s25
    %s26 = sphi 0, %s23
    %s27 = sphi 0, %s26
    %s43 = sphi 0, %s27
    %s49 = sphi 0, %s51
    %s52 = sphi 0, %s49
    %s53 = sphi 0, %s52
    %s69 = sphi 0, %s53
    %s73 = sphi 0, %s73
    %s75 = sphi 0, %s73
    %s76 = sphi 0, %s75
    %s90 = sphi 0, %s76
    %s94 = sphi 0, %s94
    %s96 = sphi 0, %s94
    %s97 = sphi 0, %s96
    %s111 = sphi 0, %s97
    %s115 = sphi 0, %s115
    %s117 = sphi 0, %s115
    %s118 = sphi 0, %s117
    %s132 = sphi 0, %s118
    %s136 = sphi 0, %s136
    %s138 = sphi 0, %s136
    %s139 = sphi 0, %s138
    %s153 = sphi 0, %s139
    %s157 = sphi 0, %s157
    %s159 = sphi 0, %s157
    %s160 = sphi 0, %s159
    %s174 = sphi 0, %s160
    %s180 = sphi 0, %s182
    %s183 = sphi 0, %s180
    %s184 = sphi 0, %s183
    %s200 = sphi 0, %s184
  $region4: #{decoder_block_forward.1} parent=0 // loop_header_branch
    %16 = sbr.rel (%p14) target = $region8
  $region5: #{decoder_block_forward.1} parent=0 // loop_body
    %s18 = ssub.s32 %s13, 1
    %s19 = ssub.s32 %s13, 2
    %s20 = sadd.s32 %s13, 1
    %s21 = ssub.s32 %s13, %s20
    %p22 = scmp.eq.s32.totalorder %s21, 0
    %s24 = sadd.s32 %s23, 1
    %s25 = scalar_select %p22, %s23, %s24
    %p28 = pneg %p22
    %p29 = scmp.eq.s32.totalorder %s13, 1
    %p30 = por %p28, %p29
    %p31 = scmp.ne.s32.totalorder %s23, %s26
    %p32 = scmp.eq.s32.totalorder %s13, 0
    %p33 = por %p31, %p32
    %p34 = scmp.ne.s32.totalorder %s23, %s26
    %p35 = scmp.eq.s32.totalorder %s18, 1
    %p36 = por %p34, %p35
    %p37 = scmp.ne.s32.totalorder %s26, %s27
    %p38 = scmp.eq.s32.totalorder %s18, 0
    %p39 = por %p37, %p38
    %p40 = scmp.ne.s32.totalorder %s26, %s27
    %p41 = scmp.eq.s32.totalorder %s19, 1
    %p42 = por %p40, %p41
    %p44 = scmp.ne.s32.totalorder %s27, %s43
    %p45 = scmp.eq.s32.totalorder %s19, 0
    %p46 = por %p44, %p45
    %s47 = ssub.s32 %s13, %s20
    %p48 = scmp.eq.s32.totalorder %s47, 0
    %s50 = sadd.s32 %s49, 1
    %s51 = scalar_select %p48, %s49, %s50
    %p54 = pneg %p48
    %p55 = scmp.eq.s32.totalorder %s13, 1
    %p56 = por %p54, %p55
    %p57 = scmp.ne.s32.totalorder %s49, %s52
    %p58 = scmp.eq.s32.totalorder %s13, 0
    %p59 = por %p57, %p58
    %p60 = scmp.ne.s32.totalorder %s49, %s52
    %p61 = scmp.eq.s32.totalorder %s18, 1
    %p62 = por %p60, %p61
    %p63 = scmp.ne.s32.totalorder %s52, %s53
    %p64 = scmp.eq.s32.totalorder %s18, 0
    %p65 = por %p63, %p64
    %p66 = scmp.ne.s32.totalorder %s52, %s53
    %p67 = scmp.eq.s32.totalorder %s19, 1
    %p68 = por %p66, %p67
    %p70 = scmp.ne.s32.totalorder %s53, %s69
    %p71 = scmp.eq.s32.totalorder %s19, 0
    %p72 = por %p70, %p71
    %s74 = sadd.s32 %s73, 1
    %p77 = scmp.eq.s32.totalorder %s13, 1
    %p78 = scmp.ne.s32.totalorder %s73, %s75
    %p79 = scmp.eq.s32.totalorder %s13, 0
    %p80 = por %p78, %p79
    %p81 = scmp.ne.s32.totalorder %s73, %s75
    %p82 = scmp.eq.s32.totalorder %s18, 1
    %p83 = por %p81, %p82
    %p84 = scmp.ne.s32.totalorder %s75, %s76
    %p85 = scmp.eq.s32.totalorder %s18, 0
    %p86 = por %p84, %p85
    %p87 = scmp.ne.s32.totalorder %s75, %s76
    %p88 = scmp.eq.s32.totalorder %s19, 1
    %p89 = por %p87, %p88
    %p91 = scmp.ne.s32.totalorder %s76, %s90
    %p92 = scmp.eq.s32.totalorder %s19, 0
    %p93 = por %p91, %p92
    %s95 = sadd.s32 %s94, 1
    %p98 = scmp.eq.s32.totalorder %s13, 1
    %p99 = scmp.ne.s32.totalorder %s94, %s96
    %p100 = scmp.eq.s32.totalorder %s13, 0
    %p101 = por %p99, %p100
    %p102 = scmp.ne.s32.totalorder %s94, %s96
    %p103 = scmp.eq.s32.totalorder %s18, 1
    %p104 = por %p102, %p103
    %p105 = scmp.ne.s32.totalorder %s96, %s97
    %p106 = scmp.eq.s32.totalorder %s18, 0
    %p107 = por %p105, %p106
    %p108 = scmp.ne.s32.totalorder %s96, %s97
    %p109 = scmp.eq.s32.totalorder %s19, 1
    %p110 = por %p108, %p109
    %p112 = scmp.ne.s32.totalorder %s97, %s111
    %p113 = scmp.eq.s32.totalorder %s19, 0
    %p114 = por %p112, %p113
    %s116 = sadd.s32 %s115, 1
    %p119 = scmp.eq.s32.totalorder %s13, 1
    %p120 = scmp.ne.s32.totalorder %s115, %s117
    %p121 = scmp.eq.s32.totalorder %s13, 0
    %p122 = por %p120, %p121
    %p123 = scmp.ne.s32.totalorder %s115, %s117
    %p124 = scmp.eq.s32.totalorder %s18, 1
    %p125 = por %p123, %p124
    %p126 = scmp.ne.s32.totalorder %s117, %s118
    %p127 = scmp.eq.s32.totalorder %s18, 0
    %p128 = por %p126, %p127
    %p129 = scmp.ne.s32.totalorder %s117, %s118
    %p130 = scmp.eq.s32.totalorder %s19, 1
    %p131 = por %p129, %p130
    %p133 = scmp.ne.s32.totalorder %s118, %s132
    %p134 = scmp.eq.s32.totalorder %s19, 0
    %p135 = por %p133, %p134
    %s137 = sadd.s32 %s136, 1
    %p140 = scmp.eq.s32.totalorder %s13, 1
    %p141 = scmp.ne.s32.totalorder %s136, %s138
    %p142 = scmp.eq.s32.totalorder %s13, 0
    %p143 = por %p141, %p142
    %p144 = scmp.ne.s32.totalorder %s136, %s138
    %p145 = scmp.eq.s32.totalorder %s18, 1
    %p146 = por %p144, %p145
    %p147 = scmp.ne.s32.totalorder %s138, %s139
    %p148 = scmp.eq.s32.totalorder %s18, 0
    %p149 = por %p147, %p148
    %p150 = scmp.ne.s32.totalorder %s138, %s139
    %p151 = scmp.eq.s32.totalorder %s19, 1
    %p152 = por %p150, %p151
    %p154 = scmp.ne.s32.totalorder %s139, %s153
    %p155 = scmp.eq.s32.totalorder %s19, 0
    %p156 = por %p154, %p155
    %s158 = sadd.s32 %s157, 1
    %p161 = scmp.eq.s32.totalorder %s13, 1
    %p162 = scmp.ne.s32.totalorder %s157, %s159
    %p163 = scmp.eq.s32.totalorder %s13, 0
    %p164 = por %p162, %p163
    %p165 = scmp.ne.s32.totalorder %s157, %s159
    %p166 = scmp.eq.s32.totalorder %s18, 1
    %p167 = por %p165, %p166
    %p168 = scmp.ne.s32.totalorder %s159, %s160
    %p169 = scmp.eq.s32.totalorder %s18, 0
    %p170 = por %p168, %p169
    %p171 = scmp.ne.s32.totalorder %s159, %s160
    %p172 = scmp.eq.s32.totalorder %s19, 1
    %p173 = por %p171, %p172
    %p175 = scmp.ne.s32.totalorder %s160, %s174
    %p176 = scmp.eq.s32.totalorder %s19, 0
    %p177 = por %p175, %p176
    %s178 = ssub.s32 %s13, %s20
    %p179 = scmp.eq.s32.totalorder %s178, 0
    %s181 = sadd.s32 %s180, 1
    %s182 = scalar_select %p179, %s180, %s181
    %p185 = pneg %p179
    %p186 = scmp.eq.s32.totalorder %s13, 1
    %p187 = por %p185, %p186
    %p188 = scmp.ne.s32.totalorder %s180, %s183
    %p189 = scmp.eq.s32.totalorder %s13, 0
    %p190 = por %p188, %p189
    %p191 = scmp.ne.s32.totalorder %s180, %s183
    %p192 = scmp.eq.s32.totalorder %s18, 1
    %p193 = por %p191, %p192
    %p194 = scmp.ne.s32.totalorder %s183, %s184
    %p195 = scmp.eq.s32.totalorder %s18, 0
    %p196 = por %p194, %p195
    %p197 = scmp.ne.s32.totalorder %s183, %s184
    %p198 = scmp.eq.s32.totalorder %s19, 1
    %p199 = por %p197, %p198
    %p201 = scmp.ne.s32.totalorder %s184, %s200
    %p202 = scmp.eq.s32.totalorder %s19, 0
    %p203 = por %p201, %p202
    %p204 = scmp.le.s32.totalorder 1, %s13
    %p205 = scmp.lt.s32.totalorder %s13, 3
    %p206 = pnand %p204, %p205
    %p207 = pneg %p206
    // Predicated region
    $region9: #{decoder_block_forward.1} parent=5 // pred_check
      _
    $region10: #{decoder_block_forward.1} parent=5 // pred_check_branch
      %209 = sbr.rel (%p206) target = $region12
    $region11: #{decoder_block_forward.1} parent=5 // pred_region
      %s210 = ssub.s32 %s13, 1
      // Predicated region
      $region13: #{decoder_block_forward.1} parent=11 // pred_check
        %p211 = pneg %p86
      $region14: #{decoder_block_forward.1} parent=11 // pred_check_branch
        %213 = sbr.rel (%p211) target = $region16
      $region15: #{decoder_block_forward.1} parent=11 // pred_region
        _
      $region16: #{decoder_block_forward.1} parent=11 // pred_fallthru
        _
      // Predicated region
      $region17: #{decoder_block_forward.1} parent=11 // pred_check
        %p214 = pneg %p107
      $region18: #{decoder_block_forward.1} parent=11 // pred_check_branch
        %216 = sbr.rel (%p214) target = $region20
      $region19: #{decoder_block_forward.1} parent=11 // pred_region
        _
      $region20: #{decoder_block_forward.1} parent=11 // pred_fallthru
        _
      // Predicated region
      $region21: #{decoder_block_forward.1} parent=11 // pred_check
        %p217 = pneg %p128
      $region22: #{decoder_block_forward.1} parent=11 // pred_check_branch
        %219 = sbr.rel (%p217) target = $region24
      $region23: #{decoder_block_forward.1} parent=11 // pred_region
        _
      $region24: #{decoder_block_forward.1} parent=11 // pred_fallthru
        _
      // Predicated region
      $region25: #{decoder_block_forward.1} parent=11 // pred_check
        %p220 = pneg %p149
      $region26: #{decoder_block_forward.1} parent=11 // pred_check_branch
        %222 = sbr.rel (%p220) target = $region28
      $region27: #{decoder_block_forward.1} parent=11 // pred_region
        _
      $region28: #{decoder_block_forward.1} parent=11 // pred_fallthru
        _
      // Predicated region
      $region29: #{decoder_block_forward.1} parent=11 // pred_check
        %p223 = pneg %p170
      $region30: #{decoder_block_forward.1} parent=11 // pred_check_branch
        %225 = sbr.rel (%p223) target = $region32
      $region31: #{decoder_block_forward.1} parent=11 // pred_region
        _
      $region32: #{decoder_block_forward.1} parent=11 // pred_fallthru
        _
    $region12: #{decoder_block_forward.1} parent=5 // pred_fallthru
      _
    %p226 = scmp.lt.s32.totalorder %s13, 2
    // Predicated region
    $region33: #{decoder_block_forward.1} parent=5 // pred_check
      %p227 = pneg %p226
    $region34: #{decoder_block_forward.1} parent=5 // pred_check_branch
      %229 = sbr.rel (%p227) target = $region36
    $region35: #{decoder_block_forward.1} parent=5 // pred_region
      // Predicated region
      $region37: #{decoder_block_forward.1} parent=35 // pred_check
        %p230 = pneg %p33
      $region38: #{decoder_block_forward.1} parent=35 // pred_check_branch
        %232 = sbr.rel (%p230) target = $region40
      $region39: #{decoder_block_forward.1} parent=35 // pred_region
        %p233 = scmp.lt.s32.totalorder %s13, 1
        %s234 = scalar_select %p233, %s13, 1
        %s235 = smul.addr %s234, 3
        %s236 = smul.addr %s235, 4
        %s237 = scalar_lea.vmem %s0, %s236
      $region40: #{decoder_block_forward.1} parent=35 // pred_fallthru
        _
      // Predicated region
      $region41: #{decoder_block_forward.1} parent=35 // pred_check
        %p238 = pneg %p59
      $region42: #{decoder_block_forward.1} parent=35 // pred_check_branch
        %240 = sbr.rel (%p238) target = $region44
      $region43: #{decoder_block_forward.1} parent=35 // pred_region
        %p241 = scmp.lt.s32.totalorder %s13, 1
        %s242 = scalar_select %p241, %s13, 1
        %s243 = smul.addr %s242, 3
        %s244 = smul.addr %s243, 4
        %s245 = scalar_lea.vmem %s1, %s244
      $region44: #{decoder_block_forward.1} parent=35 // pred_fallthru
        _
    $region36: #{decoder_block_forward.1} parent=5 // pred_fallthru
      _
    %p246 = scmp.le.s32.totalorder 1, %s13
    %p247 = scmp.lt.s32.totalorder %s13, 3
    %p248 = pnand %p246, %p247
    %p249 = pneg %p248
    // Predicated region
    $region45: #{decoder_block_forward.1} parent=5 // pred_check
      _
    $region46: #{decoder_block_forward.1} parent=5 // pred_check_branch
      %251 = sbr.rel (%p248) target = $region48
    $region47: #{decoder_block_forward.1} parent=5 // pred_region
      %s252 = ssub.s32 %s13, 1
      %p253 = scmp.lt.s32.totalorder %s18, 1
      %s254 = scalar_select %p253, %s18, 1
      %s255 = smul.addr %s254, 3
      %s256 = smul.addr %s255, 4
      %s257 = scalar_lea.vmem %s0, %s256
      %p258 = pneg %p39
      %p259 = pneg %p36
      %p260 = scmp.lt.s32.totalorder %s18, 1
      %s261 = scalar_select %p260, %s18, 1
      %s262 = smul.addr %s261, 3
      %s263 = smul.addr %s262, 4
      %s264 = scalar_lea.vmem %s1, %s263
      %p265 = pneg %p65
      %p266 = pneg %p62
      %p267 = pneg %p86
      %p268 = pneg %p83
      %p269 = pneg %p107
      %p270 = pneg %p104
      %p271 = pneg %p128
      %p272 = pneg %p125
      %p273 = pneg %p149
      %p274 = pneg %p146
      %p275 = pneg %p170
      %p276 = pneg %p167
      %p277 = pneg %p196
      %p278 = pneg %p193
      %p279 = scmp.lt.s32.totalorder %s18, 1
      %s280 = scalar_select %p279, %s18, 1
      %s281 = smul.addr %s280, 2
      %s282 = smul.addr %s281, 4
      %s283 = scalar_lea.vmem %s7, %s282
      %p284 = scmp.lt.s32.totalorder %s18, 1
      %s285 = scalar_select %p284, %s18, 1
      %s286 = smul.addr %s285, 3
      %s287 = smul.addr %s286, 4
      %s288 = scalar_lea.vmem %s0, %s287
      %p289 = scmp.lt.s32.totalorder %s18, 1
      %s290 = scalar_select %p289, %s18, 1
      %s291 = smul.addr %s290, 3
      %s292 = smul.addr %s291, 4
      %s293 = scalar_lea.vmem %s1, %s292
      %p294 = scmp.lt.s32.totalorder %s18, 1
      %s295 = scalar_select %p294, %s18, 1
      %s296 = smul.addr %s295, 2
      %s297 = smul.addr %s296, 4
      %s298 = scalar_lea.vmem %s7, %s297
      %v300 = vld [vmem:[%s288] sm:$0xf]
      %v301 = vld [vmem:[%s288 + $0x4] sm:$0xf]
      %v302 = vld [vmem:[%s2] sm:$0xf]
      %v303 = vld [vmem:[%s2 + $0x4] sm:$0xf]
      %v304 = vld [vmem:[%s2 + $0x8] sm:$0xf]
      %v305 = vld [vmem:[%s2 + $0xc] sm:$0xf]
      %v306 = vld [vmem:[%s293] sm:$0xf]
      %v307 = vld [vmem:[%s293 + $0x4] sm:$0xf]
      %v308 = vld [vmem:[%s3] sm:$0xf]
      %v309 = vld [vmem:[%s3 + $0x4] sm:$0xf]
      %v310 = vld [vmem:[%s3 + $0x8] sm:$0xf]
      %v311 = vld [vmem:[%s3 + $0xc] sm:$0xf]
      %v312 = vld [vmem:[%s3 + $0x10] sm:$0xf]
      %v313 = vld [vmem:[%s3 + $0x14] sm:$0xf]
      %v314 = vld [vmem:[%s3 + $0x18] sm:$0xf]
      %v315 = vld [vmem:[%s3 + $0x1c] sm:$0xf]
      %v318 = vunpack.c.l.b16 %v306
      %v319 = vunpack.c.l.b16 %v307
      %v320 = vpack.c.b16 %v319, %v318
      %v329 = vunpack.c.l.b16 %v308
      %v330 = vunpack.c.l.b16 %v309
      %v331 = vunpack.c.l.b16 %v310
      %v332 = vunpack.c.l.b16 %v311
      %v333 = vunpack.c.l.b16 %v312
      %v334 = vunpack.c.l.b16 %v313
      %v335 = vunpack.c.l.b16 %v314
      %v336 = vunpack.c.l.b16 %v315
      %v337 = vpack.c.b16 %v330, %v329
      %v338 = vpack.c.b16 %v332, %v331
      %v339 = vpack.c.b16 %v334, %v333
      %v340 = vpack.c.b16 %v336, %v335
      %vm345 = vcmask 523264
      %v347 = vsel %vm345, %v320, 0
      %349 = vmatprep.subr.bf16.mxu0 0
      %350 = vmatpush1.bf16.msra.mxu0 %v337
      %351 = vmatprep.subr.bf16.mxu0 0
      %352 = vmatpush1.bf16.msra.mxu0 %v338
      %353 = vmatprep.subr.bf16.mxu0 0
      %354 = vmatpush1.bf16.msra.mxu0 %v339
      %355 = vmatprep.subr.bf16.mxu0 0
      %356 = vmatpush1.bf16.msra.mxu0 %v340
      %357 = vmatprep.subr.bf16.mxu0 0
      %358 = vmatpush1.bf16.msra.mxu0 0
      %359 = vmatprep.subr.bf16.mxu0 0
      %360 = vmatpush1.bf16.msra.mxu0 0
      %361 = vmatprep.subr.bf16.mxu0 0
      %362 = vmatpush1.bf16.msra.mxu0 0
      %363 = vmatprep.subr.bf16.mxu0 0
      %364 = vmatpush1.bf16.msra.mxu0 0
      %365 = vmatprep.subr.bf16.mxu0 0
      %366 = vmatpush1.bf16.msra.mxu0 0
      %367 = vmatprep.subr.bf16.mxu0 0
      %368 = vmatpush1.bf16.msra.mxu0 0
      %369 = vmatprep.subr.bf16.mxu0 0
      %370 = vmatpush1.bf16.msra.mxu0 0
      %371 = vmatprep.subr.bf16.mxu0 0
      %372 = vmatpush1.bf16.msra.mxu0 0
      %373 = vmatprep.subr.bf16.mxu0 0
      %374 = vmatpush1.bf16.msra.mxu0 0
      %375 = vmatprep.subr.bf16.mxu0 0
      %376 = vmatpush1.bf16.msra.mxu0 0
      %377 = vmatprep.subr.bf16.mxu0 0
      %378 = vmatpush1.bf16.msra.mxu0 0
      %379 = vmatprep.subr.bf16.mxu0 0
      %380 = vmatpush1.bf16.msra.mxu0 0
      %381 = vmatprep.mubr.bf16.mxu0 0
      %382 = vmatmul.mubr.bf16.gmra.mrb[0].mxu0 %v347
      %v383 = vpop.f32.mrb[0].mxu0
      %v384 = vadd.f32 0.0, %v383
      %v385 = vpop.f32.mrb[0].mxu0
      %v386 = vpop.f32.mrb[0].mxu0
      %v387 = vadd.f32 0.0, %v386
      %v388 = vpop.f32.mrb[0].mxu0
      %389 = vdwg.mxu0
      %v392 = vunpack.c.l.b16 %v300
      %v393 = vunpack.c.l.b16 %v301
      %v394 = vpack.c.b16 %v393, %v392
      %v399 = vunpack.c.l.b16 %v302
      %v400 = vunpack.c.l.b16 %v303
      %v401 = vunpack.c.l.b16 %v304
      %v402 = vunpack.c.l.b16 %v305
      %v403 = vpack.c.b16 %v400, %v399
      %v404 = vpack.c.b16 %v402, %v401
      %vm407 = vcmask 261120
      %v409 = vsel %vm407, %v394, 0
      %411 = vmatprep.subr.bf16.mxu0 0
      %412 = vmatpush1.bf16.msra.mxu0 %v403
      %413 = vmatprep.subr.bf16.mxu0 0
      %414 = vmatpush1.bf16.msra.mxu0 %v404
      %415 = vmatprep.subr.bf16.mxu0 0
      %416 = vmatpush1.bf16.msra.mxu0 0
      %417 = vmatprep.subr.bf16.mxu0 0
      %418 = vmatpush1.bf16.msra.mxu0 0
      %419 = vmatprep.subr.bf16.mxu0 0
      %420 = vmatpush1.bf16.msra.mxu0 0
      %421 = vmatprep.subr.bf16.mxu0 0
      %422 = vmatpush1.bf16.msra.mxu0 0
      %423 = vmatprep.subr.bf16.mxu0 0
      %424 = vmatpush1.bf16.msra.mxu0 0
      %425 = vmatprep.subr.bf16.mxu0 0
      %426 = vmatpush1.bf16.msra.mxu0 0
      %427 = vmatprep.subr.bf16.mxu0 0
      %428 = vmatpush1.bf16.msra.mxu0 0
      %429 = vmatprep.subr.bf16.mxu0 0
      %430 = vmatpush1.bf16.msra.mxu0 0
      %431 = vmatprep.subr.bf16.mxu0 0
      %432 = vmatpush1.bf16.msra.mxu0 0
      %433 = vmatprep.subr.bf16.mxu0 0
      %434 = vmatpush1.bf16.msra.mxu0 0
      %435 = vmatprep.subr.bf16.mxu0 0
      %436 = vmatpush1.bf16.msra.mxu0 0
      %437 = vmatprep.subr.bf16.mxu0 0
      %438 = vmatpush1.bf16.msra.mxu0 0
      %439 = vmatprep.subr.bf16.mxu0 0
      %440 = vmatpush1.bf16.msra.mxu0 0
      %441 = vmatprep.subr.bf16.mxu0 0
      %442 = vmatpush1.bf16.msra.mxu0 0
      %443 = vmatprep.mubr.bf16.mxu0 0
      %444 = vmatmul.mubr.bf16.gmra.mrb[0].mxu0 %v409
      %v445 = vpop.f32.mrb[0].mxu0
      %v446 = vadd.f32 %v384, %v445
      %v447 = vpop.f32.mrb[0].mxu0
      %v448 = vpop.f32.mrb[0].mxu0
      %v449 = vadd.f32 %v387, %v448
      %v450 = vpop.f32.mrb[0].mxu0
      %451 = vdwg.mxu0
      %v452 = vld [vmem:[%s288] sm:$0xf]
      %v453 = vld [vmem:[%s288 + $0x4] sm:$0xf]
      %v454 = vld [vmem:[%s288 + $0x8] sm:$0x1]
      %s455 = scalar_lea.vmem %s2, 16
      %v456 = vld [vmem:[%s455] sm:$0xf]
      %v457 = vld [vmem:[%s455 + $0x4] sm:$0xf]
      %v458 = vld [vmem:[%s455 + $0x8] sm:$0xf]
      %v459 = vld [vmem:[%s455 + $0xc] sm:$0xf]
      %v460 = vld [vmem:[%s293] sm:$0xf]
      %v461 = vld [vmem:[%s293 + $0x4] sm:$0xf]
      %v462 = vld [vmem:[%s293 + $0x8] sm:$0x1]
      %s463 = scalar_lea.vmem %s3, 32
      %v464 = vld [vmem:[%s463] sm:$0xf]
      %v465 = vld [vmem:[%s463 + $0x4] sm:$0xf]
      %v466 = vld [vmem:[%s463 + $0x8] sm:$0xf]
      %v467 = vld [vmem:[%s463 + $0xc] sm:$0xf]
      %v468 = vld [vmem:[%s463 + $0x10] sm:$0xf]
      %v469 = vld [vmem:[%s463 + $0x14] sm:$0xf]
      %v470 = vld [vmem:[%s463 + $0x18] sm:$0xf]
      %v471 = vld [vmem:[%s463 + $0x1c] sm:$0xf]
      %v475 = vunpack.c.l.b16 %v460
      %v476 = vunpack.c.l.b16 %v461
      %v477 = vunpack.c.l.b16 %v462
      %v478 = vpack.c.b16 %v476, %v475
      %v479 = vpack.c.b16 %v477, %v477
      %vm480 = vsmask.f32 7424
      %v482 = vshrl.u32 %v478, 16
      %v484 = vshll.u32 %v478, 16
      %v486 = vrot.slane %v484, 1
      %v487 = vor.u32 %v482, %v486
      %v489 = vshll.u32 %v479, 16
      %v491 = vrot.slane %v489, 1
      %v492 = vsel %vm480, %v487, %v491
      %v501 = vunpack.c.l.b16 %v464
      %v502 = vunpack.c.l.b16 %v465
      %v503 = vunpack.c.l.b16 %v466
      %v504 = vunpack.c.l.b16 %v467
      %v505 = vunpack.c.l.b16 %v468
      %v506 = vunpack.c.l.b16 %v469
      %v507 = vunpack.c.l.b16 %v470
      %v508 = vunpack.c.l.b16 %v471
      %v509 = vpack.c.b16 %v502, %v501
      %v510 = vpack.c.b16 %v504, %v503
      %v511 = vpack.c.b16 %v506, %v505
      %v512 = vpack.c.b16 %v508, %v507
      %v518 = vsel %vm345, %v492, 0
      %520 = vmatprep.subr.bf16.mxu0 0
      %521 = vmatpush1.bf16.msra.mxu0 %v509
      %522 = vmatprep.subr.bf16.mxu0 0
      %523 = vmatpush1.bf16.msra.mxu0 %v510
      %524 = vmatprep.subr.bf16.mxu0 0
      %525 = vmatpush1.bf16.msra.mxu0 %v511
      %526 = vmatprep.subr.bf16.mxu0 0
      %527 = vmatpush1.bf16.msra.mxu0 %v512
      %528 = vmatprep.subr.bf16.mxu0 0
      %529 = vmatpush1.bf16.msra.mxu0 0
      %530 = vmatprep.subr.bf16.mxu0 0
      %531 = vmatpush1.bf16.msra.mxu0 0
      %532 = vmatprep.subr.bf16.mxu0 0
      %533 = vmatpush1.bf16.msra.mxu0 0
      %534 = vmatprep.subr.bf16.mxu0 0
      %535 = vmatpush1.bf16.msra.mxu0 0
      %536 = vmatprep.subr.bf16.mxu0 0
      %537 = vmatpush1.bf16.msra.mxu0 0
      %538 = vmatprep.subr.bf16.mxu0 0
      %539 = vmatpush1.bf16.msra.mxu0 0
      %540 = vmatprep.subr.bf16.mxu0 0
      %541 = vmatpush1.bf16.msra.mxu0 0
      %542 = vmatprep.subr.bf16.mxu0 0
      %543 = vmatpush1.bf16.msra.mxu0 0
      %544 = vmatprep.subr.bf16.mxu0 0
      %545 = vmatpush1.bf16.msra.mxu0 0
      %546 = vmatprep.subr.bf16.mxu0 0
      %547 = vmatpush1.bf16.msra.mxu0 0
      %548 = vmatprep.subr.bf16.mxu0 0
      %549 = vmatpush1.bf16.msra.mxu0 0
      %550 = vmatprep.subr.bf16.mxu0 0
      %551 = vmatpush1.bf16.msra.mxu0 0
      %552 = vmatprep.mubr.bf16.mxu0 0
      %553 = vmatmul.mubr.bf16.gmra.mrb[0].mxu0 %v518
      %v554 = vpop.f32.mrb[0].mxu0
      %v555 = vadd.f32 0.0, %v554
      %v556 = vpop.f32.mrb[0].mxu0
      %v557 = vpop.f32.mrb[0].mxu0
      %v558 = vadd.f32 0.0, %v557
      %v559 = vpop.f32.mrb[0].mxu0
      %560 = vdwg.mxu0
      %v564 = vunpack.c.l.b16 %v452
      %v565 = vunpack.c.l.b16 %v453
      %v566 = vunpack.c.l.b16 %v454
      %v567 = vpack.c.b16 %v565, %v564
      %v568 = vpack.c.b16 %v566, %v566
      %v570 = vshrl.u32 %v567, 16
      %v572 = vshll.u32 %v567, 16
      %v574 = vrot.slane %v572, 1
      %v575 = vor.u32 %v570, %v574
      %v577 = vshll.u32 %v568, 16
      %v579 = vrot.slane %v577, 1
      %v580 = vsel %vm480, %v575, %v579
      %v585 = vunpack.c.l.b16 %v456
      %v586 = vunpack.c.l.b16 %v457
      %v587 = vunpack.c.l.b16 %v458
      %v588 = vunpack.c.l.b16 %v459
      %v589 = vpack.c.b16 %v586, %v585
      %v590 = vpack.c.b16 %v588, %v587
      %v594 = vsel %vm407, %v580, 0
      %596 = vmatprep.subr.bf16.mxu0 0
      %597 = vmatpush1.bf16.msra.mxu0 %v589
      %598 = vmatprep.subr.bf16.mxu0 0
      %599 = vmatpush1.bf16.msra.mxu0 %v590
      %600 = vmatprep.subr.bf16.mxu0 0
      %601 = vmatpush1.bf16.msra.mxu0 0
      %602 = vmatprep.subr.bf16.mxu0 0
      %603 = vmatpush1.bf16.msra.mxu0 0
      %604 = vmatprep.subr.bf16.mxu0 0
      %605 = vmatpush1.bf16.msra.mxu0 0
      %606 = vmatprep.subr.bf16.mxu0 0
      %607 = vmatpush1.bf16.msra.mxu0 0
      %608 = vmatprep.subr.bf16.mxu0 0
      %609 = vmatpush1.bf16.msra.mxu0 0
      %610 = vmatprep.subr.bf16.mxu0 0
      %611 = vmatpush1.bf16.msra.mxu0 0
      %612 = vmatprep.subr.bf16.mxu0 0
      %613 = vmatpush1.bf16.msra.mxu0 0
      %614 = vmatprep.subr.bf16.mxu0 0
      %615 = vmatpush1.bf16.msra.mxu0 0
      %616 = vmatprep.subr.bf16.mxu0 0
      %617 = vmatpush1.bf16.msra.mxu0 0
      %618 = vmatprep.subr.bf16.mxu0 0
      %619 = vmatpush1.bf16.msra.mxu0 0
      %620 = vmatprep.subr.bf16.mxu0 0
      %621 = vmatpush1.bf16.msra.mxu0 0
      %622 = vmatprep.subr.bf16.mxu0 0
      %623 = vmatpush1.bf16.msra.mxu0 0
      %624 = vmatprep.subr.bf16.mxu0 0
      %625 = vmatpush1.bf16.msra.mxu0 0
      %626 = vmatprep.subr.bf16.mxu0 0
      %627 = vmatpush1.bf16.msra.mxu0 0
      %628 = vmatprep.mubr.bf16.mxu0 0
      %629 = vmatmul.mubr.bf16.gmra.mrb[0].mxu0 %v594
      %v630 = vpop.f32.mrb[0].mxu0
      %v631 = vadd.f32 %v555, %v630
      %v632 = vpop.f32.mrb[0].mxu0
      %v633 = vpop.f32.mrb[0].mxu0
      %v634 = vadd.f32 %v558, %v633
      %v635 = vpop.f32.mrb[0].mxu0
      %636 = vdwg.mxu0
      %v637 = vadd.f32 %v446, %v631
      %v638 = vadd.f32 %v449, %v634
      %v639 = vld [vmem:[%s288] sm:$0xe]
      %s640 = scalar_lea.vmem %s2, 32
      %v641 = vld [vmem:[%s640] sm:$0xf]
      %v642 = vld [vmem:[%s640 + $0x4] sm:$0xf]
      %v643 = vld [vmem:[%s640 + $0x8] sm:$0xf]
      %v644 = vld [vmem:[%s640 + $0xc] sm:$0xf]
      %v645 = vld [vmem:[%s293] sm:$0xe]
      %s646 = scalar_lea.vmem %s3, 64
      %v647 = vld [vmem:[%s646] sm:$0xf]
      %v648 = vld [vmem:[%s646 + $0x4] sm:$0xf]
      %v649 = vld [vmem:[%s646 + $0x8] sm:$0xf]
      %v650 = vld [vmem:[%s646 + $0xc] sm:$0xf]
      %v651 = vld [vmem:[%s646 + $0x10] sm:$0xf]
      %v652 = vld [vmem:[%s646 + $0x14] sm:$0xf]
      %v653 = vld [vmem:[%s646 + $0x18] sm:$0xf]
      %v654 = vld [vmem:[%s646 + $0x1c] sm:$0xf]
      %v656 = vunpack.c.l.b16 %v645
      %v657 = vpack.c.b16 %v476, %v656
      %vm658 = vcmask 1046528
      %v659 = vrot.slane %v657, 1
      %v660 = vrot.slane %v479, 1
      %v661 = vsel %vm658, %v659, %v660
      %v670 = vunpack.c.l.b16 %v647
      %v671 = vunpack.c.l.b16 %v648
      %v672 = vunpack.c.l.b16 %v649
      %v673 = vunpack.c.l.b16 %v650
      %v674 = vunpack.c.l.b16 %v651
      %v675 = vunpack.c.l.b16 %v652
      %v676 = vunpack.c.l.b16 %v653
      %v677 = vunpack.c.l.b16 %v654
      %v678 = vpack.c.b16 %v671, %v670
      %v679 = vpack.c.b16 %v673, %v672
      %v680 = vpack.c.b16 %v675, %v674
      %v681 = vpack.c.b16 %v677, %v676
      %v687 = vsel %vm345, %v661, 0
      %689 = vmatprep.subr.bf16.mxu0 0
      %690 = vmatpush1.bf16.msra.mxu0 %v678
      %691 = vmatprep.subr.bf16.mxu0 0
      %692 = vmatpush1.bf16.msra.mxu0 %v679
      %693 = vmatprep.subr.bf16.mxu0 0
      %694 = vmatpush1.bf16.msra.mxu0 %v680
      %695 = vmatprep.subr.bf16.mxu0 0
      %696 = vmatpush1.bf16.msra.mxu0 %v681
      %697 = vmatprep.subr.bf16.mxu0 0
      %698 = vmatpush1.bf16.msra.mxu0 0
      %699 = vmatprep.subr.bf16.mxu0 0
      %700 = vmatpush1.bf16.msra.mxu0 0
      %701 = vmatprep.subr.bf16.mxu0 0
      %702 = vmatpush1.bf16.msra.mxu0 0
      %703 = vmatprep.subr.bf16.mxu0 0
      %704 = vmatpush1.bf16.msra.mxu0 0
      %705 = vmatprep.subr.bf16.mxu0 0
      %706 = vmatpush1.bf16.msra.mxu0 0
      %707 = vmatprep.subr.bf16.mxu0 0
      %708 = vmatpush1.bf16.msra.mxu0 0
      %709 = vmatprep.subr.bf16.mxu0 0
      %710 = vmatpush1.bf16.msra.mxu0 0
      %711 = vmatprep.subr.bf16.mxu0 0
      %712 = vmatpush1.bf16.msra.mxu0 0
      %713 = vmatprep.subr.bf16.mxu0 0
      %714 = vmatpush1.bf16.msra.mxu0 0
      %715 = vmatprep.subr.bf16.mxu0 0
      %716 = vmatpush1.bf16.msra.mxu0 0
      %717 = vmatprep.subr.bf16.mxu0 0
      %718 = vmatpush1.bf16.msra.mxu0 0
      %719 = vmatprep.subr.bf16.mxu0 0
      %720 = vmatpush1.bf16.msra.mxu0 0
      %721 = vmatprep.mubr.bf16.mxu0 0
      %722 = vmatmul.mubr.bf16.gmra.mrb[0].mxu0 %v687
      %v723 = vpop.f32.mrb[0].mxu0
      %v724 = vadd.f32 0.0, %v723
      %v725 = vpop.f32.mrb[0].mxu0
      %v726 = vpop.f32.mrb[0].mxu0
      %v727 = vadd.f32 0.0, %v726
      %v728 = vpop.f32.mrb[0].mxu0
      %729 = vdwg.mxu0
      %v731 = vunpack.c.l.b16 %v639
      %v732 = vpack.c.b16 %v565, %v731
      %v733 = vrot.slane %v732, 1
      %v734 = vrot.slane %v568, 1
      %v735 = vsel %vm658, %v733, %v734
      %v740 = vunpack.c.l.b16 %v641
      %v741 = vunpack.c.l.b16 %v642
      %v742 = vunpack.c.l.b16 %v643
      %v743 = vunpack.c.l.b16 %v644
      %v744 = vpack.c.b16 %v741, %v740
      %v745 = vpack.c.b16 %v743, %v742
      %v749 = vsel %vm407, %v735, 0
      %751 = vmatprep.subr.bf16.mxu0 0
      %752 = vmatpush1.bf16.msra.mxu0 %v744
      %753 = vmatprep.subr.bf16.mxu0 0
      %754 = vmatpush1.bf16.msra.mxu0 %v745
      %755 = vmatprep.subr.bf16.mxu0 0
      %756 = vmatpush1.bf16.msra.mxu0 0
      %757 = vmatprep.subr.bf16.mxu0 0
      %758 = vmatpush1.bf16.msra.mxu0 0
      %759 = vmatprep.subr.bf16.mxu0 0
      %760 = vmatpush1.bf16.msra.mxu0 0
      %761 = vmatprep.subr.bf16.mxu0 0
      %762 = vmatpush1.bf16.msra.mxu0 0
      %763 = vmatprep.subr.bf16.mxu0 0
      %764 = vmatpush1.bf16.msra.mxu0 0
      %765 = vmatprep.subr.bf16.mxu0 0
      %766 = vmatpush1.bf16.msra.mxu0 0
      %767 = vmatprep.subr.bf16.mxu0 0
      %768 = vmatpush1.bf16.msra.mxu0 0
      %769 = vmatprep.subr.bf16.mxu0 0
      %770 = vmatpush1.bf16.msra.mxu0 0
      %771 = vmatprep.subr.bf16.mxu0 0
      %772 = vmatpush1.bf16.msra.mxu0 0
      %773 = vmatprep.subr.bf16.mxu0 0
      %774 = vmatpush1.bf16.msra.mxu0 0
      %775 = vmatprep.subr.bf16.mxu0 0
      %776 = vmatpush1.bf16.msra.mxu0 0
      %777 = vmatprep.subr.bf16.mxu0 0
      %778 = vmatpush1.bf16.msra.mxu0 0
      %779 = vmatprep.subr.bf16.mxu0 0
      %780 = vmatpush1.bf16.msra.mxu0 0
      %781 = vmatprep.subr.bf16.mxu0 0
      %782 = vmatpush1.bf16.msra.mxu0 0
      %783 = vmatprep.mubr.bf16.mxu0 0
      %784 = vmatmul.mubr.bf16.gmra.mrb[0].mxu0 %v749
      %v785 = vpop.f32.mrb[0].mxu0
      %v786 = vadd.f32 %v724, %v785
      %v787 = vpop.f32.mrb[0].mxu0
      %v788 = vpop.f32.mrb[0].mxu0
      %v789 = vadd.f32 %v727, %v788
      %v790 = vpop.f32.mrb[0].mxu0
      %791 = vdwg.mxu0
      %v792 = vadd.f32 %v637, %v786
      %v793 = vadd.f32 %v638, %v789
      %v794 = vld [vmem:[%s4] sm:$0x1]
      %v796 = vlaneseq
      %v797 = vshrl.u32 %v796, 7
      %v798 = vsub.s32 0, %v797
      %v799 = vrot.slane %v794, %v798
      %v801 = vadd.f32 %v792, %v799
      %v802 = vadd.f32 %v793, %v799
      %v803 = vmax.f32 %v801, 0.0
      %v804 = vmax.f32 %v802, 0.0
      %v805 = vpack.c.bf16 %v804, %v803
      %v806 = vlaneseq
      %v807 = vshrl.u32 %v806, 7
      %v808 = vadd.s32 %v807, 8
      %v809 = vlaneseq
      %v810 = vand.u32 %v809, 127
      %v811 = vadd.s32 %v810, 1
      %vm812 = vcmp.eq.s32.totalorder %v807, %v811
      %vm813 = vcmp.eq.s32.totalorder %v808, %v811
      %v814 = vsel %vm812, 1, 0
      %v815 = vsel %vm813, 1, 0
      %v816 = vcvt.s32.f32 %v814
      %v817 = vcvt.s32.f32 %v815
      %v818 = vpack.c.bf16 %v817, %v816
      %v819 = vadd.s32 %v807, 1
      %v820 = vadd.s32 %v808, 1
      %vm821 = vcmp.eq.s32.totalorder %v810, %v819
      %vm822 = vcmp.eq.s32.totalorder %v810, %v820
      %v823 = vsel %vm821, 1, 0
      %v824 = vsel %vm822, 1, 0
      %v825 = vcvt.s32.f32 %v823
      %v826 = vcvt.s32.f32 %v824
      %v827 = vpack.c.bf16 %v826, %v825
      %vm828 = vcmask 130048
      %v830 = vsel %vm828, %v818, 0
      %832 = vmatprep.subr.bf16.mxu0 0
      %833 = vmatpush1.bf16.msra.mxu0 %v805
      %834 = vmatprep.subr.bf16.mxu0 0
      %835 = vmatpush1.bf16.msra.mxu0 0
      %836 = vmatprep.subr.bf16.mxu0 0
      %837 = vmatpush1.bf16.msra.mxu0 0
      %838 = vmatprep.subr.bf16.mxu0 0
      %839 = vmatpush1.bf16.msra.mxu0 0
      %840 = vmatprep.subr.bf16.mxu0 0
      %841 = vmatpush1.bf16.msra.mxu0 0
      %842 = vmatprep.subr.bf16.mxu0 0
      %843 = vmatpush1.bf16.msra.mxu0 0
      %844 = vmatprep.subr.bf16.mxu0 0
      %845 = vmatpush1.bf16.msra.mxu0 0
      %846 = vmatprep.subr.bf16.mxu0 0
      %847 = vmatpush1.bf16.msra.mxu0 0
      %848 = vmatprep.subr.bf16.mxu0 0
      %849 = vmatpush1.bf16.msra.mxu0 0
      %850 = vmatprep.subr.bf16.mxu0 0
      %851 = vmatpush1.bf16.msra.mxu0 0
      %852 = vmatprep.subr.bf16.mxu0 0
      %853 = vmatpush1.bf16.msra.mxu0 0
      %854 = vmatprep.subr.bf16.mxu0 0
      %855 = vmatpush1.bf16.msra.mxu0 0
      %856 = vmatprep.subr.bf16.mxu0 0
      %857 = vmatpush1.bf16.msra.mxu0 0
      %858 = vmatprep.subr.bf16.mxu0 0
      %859 = vmatpush1.bf16.msra.mxu0 0
      %860 = vmatprep.subr.bf16.mxu0 0
      %861 = vmatpush1.bf16.msra.mxu0 0
      %862 = vmatprep.subr.bf16.mxu0 0
      %863 = vmatpush1.bf16.msra.mxu0 0
      %864 = vmatprep.mubr.bf16.mxu0 0
      %865 = vmatmul.mubr.bf16.gmra.mrb[0].mxu0 %v830
      %v866 = vpop.f32.mrb[0].mxu0
      %v867 = vadd.f32 0.0, %v866
      %v868 = vpop.f32.mrb[0].mxu0
      %v869 = vpop.f32.mrb[0].mxu0
      %v870 = vadd.f32 0.0, %v869
      %v871 = vpop.f32.mrb[0].mxu0
      %872 = vdwg.mxu0
      %v873 = vpack.c.bf16 %v870, %v867
      %v875 = vsel %vm828, %v827, 0
      %877 = vmatprep.subr.bf16.mxu0 0
      %878 = vmatpush1.bf16.msra.mxu0 %v805
      %879 = vmatprep.subr.bf16.mxu0 0
      %880 = vmatpush1.bf16.msra.mxu0 0
      %881 = vmatprep.subr.bf16.mxu0 0
      %882 = vmatpush1.bf16.msra.mxu0 0
      %883 = vmatprep.subr.bf16.mxu0 0
      %884 = vmatpush1.bf16.msra.mxu0 0
      %885 = vmatprep.subr.bf16.mxu0 0
      %886 = vmatpush1.bf16.msra.mxu0 0
      %887 = vmatprep.subr.bf16.mxu0 0
      %888 = vmatpush1.bf16.msra.mxu0 0
      %889 = vmatprep.subr.bf16.mxu0 0
      %890 = vmatpush1.bf16.msra.mxu0 0
      %891 = vmatprep.subr.bf16.mxu0 0
      %892 = vmatpush1.bf16.msra.mxu0 0
      %893 = vmatprep.subr.bf16.mxu0 0
      %894 = vmatpush1.bf16.msra.mxu0 0
      %895 = vmatprep.subr.bf16.mxu0 0
      %896 = vmatpush1.bf16.msra.mxu0 0
      %897 = vmatprep.subr.bf16.mxu0 0
      %898 = vmatpush1.bf16.msra.mxu0 0
      %899 = vmatprep.subr.bf16.mxu0 0
      %900 = vmatpush1.bf16.msra.mxu0 0
      %901 = vmatprep.subr.bf16.mxu0 0
      %902 = vmatpush1.bf16.msra.mxu0 0
      %903 = vmatprep.subr.bf16.mxu0 0
      %904 = vmatpush1.bf16.msra.mxu0 0
      %905 = vmatprep.subr.bf16.mxu0 0
      %906 = vmatpush1.bf16.msra.mxu0 0
      %907 = vmatprep.subr.bf16.mxu0 0
      %908 = vmatpush1.bf16.msra.mxu0 0
      %909 = vmatprep.mubr.bf16.mxu0 0
      %910 = vmatmul.mubr.bf16.gmra.mrb[0].mxu0 %v875
      %v911 = vpop.f32.mrb[0].mxu0
      %v912 = vadd.f32 0.0, %v911
      %v913 = vpop.f32.mrb[0].mxu0
      %v914 = vpop.f32.mrb[0].mxu0
      %v915 = vadd.f32 0.0, %v914
      %v916 = vpop.f32.mrb[0].mxu0
      %917 = vdwg.mxu0
      %v918 = vpack.c.bf16 %v915, %v912
      %v919 = vld [vmem:[%s5] sm:$0xf]
      %v920 = vld [vmem:[%s5 + $0x4] sm:$0xf]
      %v921 = vld [vmem:[%s5 + $0x8] sm:$0xf]
      %v922 = vld [vmem:[%s5 + $0xc] sm:$0xf]
      %v923 = vld [vmem:[%s5 + $0x10] sm:$0xf]
      %v924 = vld [vmem:[%s5 + $0x14] sm:$0xf]
      %v925 = vld [vmem:[%s5 + $0x18] sm:$0xf]
      %v926 = vld [vmem:[%s5 + $0x1c] sm:$0xf]
      %v927 = vld [vmem:[%s5 + $0x20] sm:$0xf]
      %v928 = vld [vmem:[%s5 + $0x24] sm:$0xf]
      %v929 = vld [vmem:[%s5 + $0x28] sm:$0xf]
      %v930 = vld [vmem:[%s5 + $0x2c] sm:$0xf]
      %v931 = vld [vmem:[%s5 + $0x30] sm:$0xf]
      %v932 = vld [vmem:[%s5 + $0x34] sm:$0xf]
      %v933 = vld [vmem:[%s5 + $0x38] sm:$0xf]
      %v934 = vld [vmem:[%s5 + $0x3c] sm:$0xf]
      %s935 = scalar_lea.vmem %s5, 64
      %v936 = vld [vmem:[%s935] sm:$0xf]
      %v937 = vld [vmem:[%s935 + $0x4] sm:$0xf]
      %v938 = vld [vmem:[%s935 + $0x8] sm:$0xf]
      %v939 = vld [vmem:[%s935 + $0xc] sm:$0xf]
      %v940 = vld [vmem:[%s935 + $0x10] sm:$0xf]
      %v941 = vld [vmem:[%s935 + $0x14] sm:$0xf]
      %v942 = vld [vmem:[%s935 + $0x18] sm:$0xf]
      %v943 = vld [vmem:[%s935 + $0x1c] sm:$0xf]
      %v944 = vld [vmem:[%s935 + $0x20] sm:$0xf]
      %v945 = vld [vmem:[%s935 + $0x24] sm:$0xf]
      %v946 = vld [vmem:[%s935 + $0x28] sm:$0xf]
      %v947 = vld [vmem:[%s935 + $0x2c] sm:$0xf]
      %v948 = vld [vmem:[%s935 + $0x30] sm:$0xf]
      %v949 = vld [vmem:[%s935 + $0x34] sm:$0xf]
      %v950 = vld [vmem:[%s935 + $0x38] sm:$0xf]
      %v951 = vld [vmem:[%s935 + $0x3c] sm:$0xf]
      %v968 = vunpack.c.l.b16 %v936
      %v969 = vunpack.c.l.b16 %v937
      %v970 = vunpack.c.l.b16 %v938
      %v971 = vunpack.c.l.b16 %v939
      %v972 = vunpack.c.l.b16 %v940
      %v973 = vunpack.c.l.b16 %v941
      %v974 = vunpack.c.l.b16 %v942
      %v975 = vunpack.c.l.b16 %v943
      %v976 = vunpack.c.l.b16 %v944
      %v977 = vunpack.c.l.b16 %v945
      %v978 = vunpack.c.l.b16 %v946
      %v979 = vunpack.c.l.b16 %v947
      %v980 = vunpack.c.l.b16 %v948
      %v981 = vunpack.c.l.b16 %v949
      %v982 = vunpack.c.l.b16 %v950
      %v983 = vunpack.c.l.b16 %v951
      %v984 = vpack.c.b16 %v969, %v968
      %v985 = vpack.c.b16 %v971, %v970
      %v986 = vpack.c.b16 %v973, %v972
      %v987 = vpack.c.b16 %v975, %v974
      %v988 = vpack.c.b16 %v977, %v976
      %v989 = vpack.c.b16 %v979, %v978
      %v990 = vpack.c.b16 %v981, %v980
      %v991 = vpack.c.b16 %v983, %v982
      %1000 = vmatprep.subr.bf16.mxu0 0
      %1001 = vmatpush1.bf16.msra.mxu0 %v984
      %1002 = vmatprep.subr.bf16.mxu0 0
      %1003 = vmatpush1.bf16.msra.mxu0 %v985
      %1004 = vmatprep.subr.bf16.mxu0 0
      %1005 = vmatpush1.bf16.msra.mxu0 %v986
      %1006 = vmatprep.subr.bf16.mxu0 0
      %1007 = vmatpush1.bf16.msra.mxu0 %v987
      %1008 = vmatprep.subr.bf16.mxu0 0
      %1009 = vmatpush1.bf16.msra.mxu0 %v988
      %1010 = vmatprep.subr.bf16.mxu0 0
      %1011 = vmatpush1.bf16.msra.mxu0 %v989
      %1012 = vmatprep.subr.bf16.mxu0 0
      %1013 = vmatpush1.bf16.msra.mxu0 %v990
      %1014 = vmatprep.subr.bf16.mxu0 0
      %1015 = vmatpush1.bf16.msra.mxu0 %v991
      %1016 = vmatprep.subr.bf16.mxu0 0
      %1017 = vmatpush1.bf16.msra.mxu0 0
      %1018 = vmatprep.subr.bf16.mxu0 0
      %1019 = vmatpush1.bf16.msra.mxu0 0
      %1020 = vmatprep.subr.bf16.mxu0 0
      %1021 = vmatpush1.bf16.msra.mxu0 0
      %1022 = vmatprep.subr.bf16.mxu0 0
      %1023 = vmatpush1.bf16.msra.mxu0 0
      %1024 = vmatprep.subr.bf16.mxu0 0
      %1025 = vmatpush1.bf16.msra.mxu0 0
      %1026 = vmatprep.subr.bf16.mxu0 0
      %1027 = vmatpush1.bf16.msra.mxu0 0
      %1028 = vmatprep.subr.bf16.mxu0 0
      %1029 = vmatpush1.bf16.msra.mxu0 0
      %1030 = vmatprep.subr.bf16.mxu0 0
      %1031 = vmatpush1.bf16.msra.mxu0 0
      %1032 = vmatprep.mubr.bf16.mxu0 0
      %1033 = vmatmul.mubr.bf16.gmra.mrb[0].mxu0 %v805
      %v1034 = vpop.f32.mrb[0].mxu0
      %v1035 = vadd.f32 0.0, %v1034
      %v1036 = vpop.f32.mrb[0].mxu0
      %v1037 = vpop.f32.mrb[0].mxu0
      %v1038 = vadd.f32 0.0, %v1037
      %v1039 = vpop.f32.mrb[0].mxu0
      %1040 = vdwg.mxu0
      %v1057 = vunpack.c.l.b16 %v919
      %v1058 = vunpack.c.l.b16 %v920
      %v1059 = vunpack.c.l.b16 %v921
      %v1060 = vunpack.c.l.b16 %v922
      %v1061 = vunpack.c.l.b16 %v923
      %v1062 = vunpack.c.l.b16 %v924
      %v1063 = vunpack.c.l.b16 %v925
      %v1064 = vunpack.c.l.b16 %v926
      %v1065 = vunpack.c.l.b16 %v927
      %v1066 = vunpack.c.l.b16 %v928
      %v1067 = vunpack.c.l.b16 %v929
      %v1068 = vunpack.c.l.b16 %v930
      %v1069 = vunpack.c.l.b16 %v931
      %v1070 = vunpack.c.l.b16 %v932
      %v1071 = vunpack.c.l.b16 %v933
      %v1072 = vunpack.c.l.b16 %v934
      %v1073 = vpack.c.b16 %v1058, %v1057
      %v1074 = vpack.c.b16 %v1060, %v1059
      %v1075 = vpack.c.b16 %v1062, %v1061
      %v1076 = vpack.c.b16 %v1064, %v1063
      %v1077 = vpack.c.b16 %v1066, %v1065
      %v1078 = vpack.c.b16 %v1068, %v1067
      %v1079 = vpack.c.b16 %v1070, %v1069
      %v1080 = vpack.c.b16 %v1072, %v1071
      %1089 = vmatprep.subr.bf16.mxu0 0
      %1090 = vmatpush1.bf16.msra.mxu0 %v1073
      %1091 = vmatprep.subr.bf16.mxu0 0
      %1092 = vmatpush1.bf16.msra.mxu0 %v1074
      %1093 = vmatprep.subr.bf16.mxu0 0
      %1094 = vmatpush1.bf16.msra.mxu0 %v1075
      %1095 = vmatprep.subr.bf16.mxu0 0
      %1096 = vmatpush1.bf16.msra.mxu0 %v1076
      %1097 = vmatprep.subr.bf16.mxu0 0
      %1098 = vmatpush1.bf16.msra.mxu0 %v1077
      %1099 = vmatprep.subr.bf16.mxu0 0
      %1100 = vmatpush1.bf16.msra.mxu0 %v1078
      %1101 = vmatprep.subr.bf16.mxu0 0
      %1102 = vmatpush1.bf16.msra.mxu0 %v1079
      %1103 = vmatprep.subr.bf16.mxu0 0
      %1104 = vmatpush1.bf16.msra.mxu0 %v1080
      %1105 = vmatprep.subr.bf16.mxu0 0
      %1106 = vmatpush1.bf16.msra.mxu0 0
      %1107 = vmatprep.subr.bf16.mxu0 0
      %1108 = vmatpush1.bf16.msra.mxu0 0
      %1109 = vmatprep.subr.bf16.mxu0 0
      %1110 = vmatpush1.bf16.msra.mxu0 0
      %1111 = vmatprep.subr.bf16.mxu0 0
      %1112 = vmatpush1.bf16.msra.mxu0 0
      %1113 = vmatprep.subr.bf16.mxu0 0
      %1114 = vmatpush1.bf16.msra.mxu0 0
      %1115 = vmatprep.subr.bf16.mxu0 0
      %1116 = vmatpush1.bf16.msra.mxu0 0
      %1117 = vmatprep.subr.bf16.mxu0 0
      %1118 = vmatpush1.bf16.msra.mxu0 0
      %1119 = vmatprep.subr.bf16.mxu0 0
      %1120 = vmatpush1.bf16.msra.mxu0 0
      %1121 = vmatprep.mubr.bf16.mxu0 0
      %1122 = vmatmul.mubr.bf16.gmra.mrb[0].mxu0 %v873
      %v1123 = vpop.f32.mrb[0].mxu0
      %v1124 = vadd.f32 %v1035, %v1123
      %v1125 = vpop.f32.mrb[0].mxu0
      %v1126 = vpop.f32.mrb[0].mxu0
      %v1127 = vadd.f32 %v1038, %v1126
      %v1128 = vpop.f32.mrb[0].mxu0
      %1129 = vdwg.mxu0
      %s1130 = scalar_lea.vmem %s5, 128
      %v1131 = vld [vmem:[%s1130] sm:$0xf]
      %v1132 = vld [vmem:[%s1130 + $0x4] sm:$0xf]
      %v1133 = vld [vmem:[%s1130 + $0x8] sm:$0xf]
      %v1134 = vld [vmem:[%s1130 + $0xc] sm:$0xf]
      %v1135 = vld [vmem:[%s1130 + $0x10] sm:$0xf]
      %v1136 = vld [vmem:[%s1130 + $0x14] sm:$0xf]
      %v1137 = vld [vmem:[%s1130 + $0x18] sm:$0xf]
      %v1138 = vld [vmem:[%s1130 + $0x1c] sm:$0xf]
      %v1139 = vld [vmem:[%s1130 + $0x20] sm:$0xf]
      %v1140 = vld [vmem:[%s1130 + $0x24] sm:$0xf]
      %v1141 = vld [vmem:[%s1130 + $0x28] sm:$0xf]
      %v1142 = vld [vmem:[%s1130 + $0x2c] sm:$0xf]
      %v1143 = vld [vmem:[%s1130 + $0x30] sm:$0xf]
      %v1144 = vld [vmem:[%s1130 + $0x34] sm:$0xf]
      %v1145 = vld [vmem:[%s1130 + $0x38] sm:$0xf]
      %v1146 = vld [vmem:[%s1130 + $0x3c] sm:$0xf]
      %v1163 = vunpack.c.l.b16 %v1131
      %v1164 = vunpack.c.l.b16 %v1132
      %v1165 = vunpack.c.l.b16 %v1133
      %v1166 = vunpack.c.l.b16 %v1134
      %v1167 = vunpack.c.l.b16 %v1135
      %v1168 = vunpack.c.l.b16 %v1136
      %v1169 = vunpack.c.l.b16 %v1137
      %v1170 = vunpack.c.l.b16 %v1138
      %v1171 = vunpack.c.l.b16 %v1139
      %v1172 = vunpack.c.l.b16 %v1140
      %v1173 = vunpack.c.l.b16 %v1141
      %v1174 = vunpack.c.l.b16 %v1142
      %v1175 = vunpack.c.l.b16 %v1143
      %v1176 = vunpack.c.l.b16 %v1144
      %v1177 = vunpack.c.l.b16 %v1145
      %v1178 = vunpack.c.l.b16 %v1146
      %v1179 = vpack.c.b16 %v1164, %v1163
      %v1180 = vpack.c.b16 %v1166, %v1165
      %v1181 = vpack.c.b16 %v1168, %v1167
      %v1182 = vpack.c.b16 %v1170, %v1169
      %v1183 = vpack.c.b16 %v1172, %v1171
      %v1184 = vpack.c.b16 %v1174, %v1173
      %v1185 = vpack.c.b16 %v1176, %v1175
      %v1186 = vpack.c.b16 %v1178, %v1177
      %1195 = vmatprep.subr.bf16.mxu0 0
      %1196 = vmatpush1.bf16.msra.mxu0 %v1179
      %1197 = vmatprep.subr.bf16.mxu0 0
      %1198 = vmatpush1.bf16.msra.mxu0 %v1180
      %1199 = vmatprep.subr.bf16.mxu0 0
      %1200 = vmatpush1.bf16.msra.mxu0 %v1181
      %1201 = vmatprep.subr.bf16.mxu0 0
      %1202 = vmatpush1.bf16.msra.mxu0 %v1182
      %1203 = vmatprep.subr.bf16.mxu0 0
      %1204 = vmatpush1.bf16.msra.mxu0 %v1183
      %1205 = vmatprep.subr.bf16.mxu0 0
      %1206 = vmatpush1.bf16.msra.mxu0 %v1184
      %1207 = vmatprep.subr.bf16.mxu0 0
      %1208 = vmatpush1.bf16.msra.mxu0 %v1185
      %1209 = vmatprep.subr.bf16.mxu0 0
      %1210 = vmatpush1.bf16.msra.mxu0 %v1186
      %1211 = vmatprep.subr.bf16.mxu0 0
      %1212 = vmatpush1.bf16.msra.mxu0 0
      %1213 = vmatprep.subr.bf16.mxu0 0
      %1214 = vmatpush1.bf16.msra.mxu0 0
      %1215 = vmatprep.subr.bf16.mxu0 0
      %1216 = vmatpush1.bf16.msra.mxu0 0
      %1217 = vmatprep.subr.bf16.mxu0 0
      %1218 = vmatpush1.bf16.msra.mxu0 0
      %1219 = vmatprep.subr.bf16.mxu0 0
      %1220 = vmatpush1.bf16.msra.mxu0 0
      %1221 = vmatprep.subr.bf16.mxu0 0
      %1222 = vmatpush1.bf16.msra.mxu0 0
      %1223 = vmatprep.subr.bf16.mxu0 0
      %1224 = vmatpush1.bf16.msra.mxu0 0
      %1225 = vmatprep.subr.bf16.mxu0 0
      %1226 = vmatpush1.bf16.msra.mxu0 0
      %1227 = vmatprep.mubr.bf16.mxu0 0
      %1228 = vmatmul.mubr.bf16.gmra.mrb[0].mxu0 %v918
      %v1229 = vpop.f32.mrb[0].mxu0
      %v1230 = vadd.f32 0.0, %v1229
      %v1231 = vpop.f32.mrb[0].mxu0
      %v1232 = vpop.f32.mrb[0].mxu0
      %v1233 = vadd.f32 0.0, %v1232
      %v1234 = vpop.f32.mrb[0].mxu0
      %1235 = vdwg.mxu0
      %v1236 = vadd.f32 %v1124, %v1230
      %v1237 = vadd.f32 %v1127, %v1233
      %v1238 = vld [vmem:[%s6] sm:$0x1]
      %v1240 = vlaneseq
      %v1241 = vshrl.u32 %v1240, 7
      %v1242 = vsub.s32 0, %v1241
      %v1243 = vrot.slane %v1238, %v1242
      %v1245 = vadd.f32 %v1236, %v1243
      %v1246 = vadd.f32 %v1237, %v1243
      %v1247 = vmax.f32 %v1245, 0.0
      %v1248 = vmax.f32 %v1246, 0.0
      %v1249 = vpack.c.bf16 %v1248, %v1247
      %v1251 = vunpack.c.l.b16 %v1249
      %v1252 = vunpack.c.h.b16 %v1249
      %v1253 = vpack.c.b16 %v1251, %v1251
      %v1254 = vpack.c.b16 %v1252, %v1252
      %1257 = vst [vmem:[%s298] sm:$0xf] %v1253
      %1258 = vst [vmem:[%s298 + $0x4] sm:$0xf] %v1254
      %p1259 = scmp.lt.s32.totalorder %s18, 1
      %s1260 = scalar_select %p1259, %s18, 1
      %s1261 = smul.addr %s1260, 2
      %s1262 = smul.addr %s1261, 4
      %s1263 = scalar_lea.vmem %s7, %s1262
      // Predicated region
      $region49: #{decoder_block_forward.1} parent=47 // pred_check
        %p1264 = pneg %p193
      $region50: #{decoder_block_forward.1} parent=47 // pred_check_branch
        %1266 = sbr.rel (%p1264) target = $region52
      $region51: #{decoder_block_forward.1} parent=47 // pred_region
        _
      $region52: #{decoder_block_forward.1} parent=47 // pred_fallthru
        _
    $region48: #{decoder_block_forward.1} parent=5 // pred_fallthru
      _
    %p1267 = scmp.le.s32.totalorder 2, %s13
    // Predicated region
    $region53: #{decoder_block_forward.1} parent=5 // pred_check
      %p1268 = pneg %p1267
    $region54: #{decoder_block_forward.1} parent=5 // pred_check_branch
      %1270 = sbr.rel (%p1268) target = $region56
    $region55: #{decoder_block_forward.1} parent=5 // pred_region
      %s1271 = ssub.s32 %s13, 2
      // Predicated region
      $region57: #{decoder_block_forward.1} parent=55 // pred_check
        %p1272 = pneg %p199
      $region58: #{decoder_block_forward.1} parent=55 // pred_check_branch
        %1274 = sbr.rel (%p1272) target = $region60
      $region59: #{decoder_block_forward.1} parent=55 // pred_region
        %p1275 = scmp.lt.s32.totalorder %s19, 1
        %s1276 = scalar_select %p1275, %s19, 1
        %s1277 = smul.addr %s1276, 2
        %s1278 = smul.addr %s1277, 4
        %s1279 = scalar_lea.vmem %s7, %s1278
      $region60: #{decoder_block_forward.1} parent=55 // pred_fallthru
        _
    $region56: #{decoder_block_forward.1} parent=5 // pred_fallthru
      _
  $region6: #{decoder_block_forward.1} parent=0 // loop_footer
    %s17 = sadd.s32 1, %s13
  $region7: #{decoder_block_forward.1} parent=0 // loop_footer_branch
    %12 = sbr.rel target = $region3
  $region8: #{decoder_block_forward.1} parent=0 // loop_exit
    _

</llo_original>
